<compile_context>
chip_gen: v6e
topology: v6e:2x2x1
jax: 0.10.0
libtpu: 0.0.40
codegen_flags: <defaults>
</compile_context>

<pallas_src>
import functools

import jax
import jax.numpy as jnp
from jax.experimental import pallas as pl
from jax.experimental.pallas import tpu as pltpu

EPS = 1e-5
LANES = 128

# Row layout of the packed parameter array (all rows 128 lanes, unused lanes 0).
_S1, _T1, _SP, _TP = 0, 1, 2, 3   # folded 1x1 affines: branch1x1, branch_pool (/3 folded, mean absorbed)
_WS5, _WT5 = 4, 9                 # 5 rows each: pre-contracted branch5x5_2 taps (lanes 64:128)
_W3S, _W3T = 14, 17               # 3 rows each: pre-contracted branch3x3_2 taps (lanes 0:96)
_G22, _B22 = 20, 21               # bn2_2 gamma/beta (lanes 64:128)
_G32, _B32 = 22, 23               # bn3_2 gamma/beta (lanes 0:96)
_G33, _B33 = 24, 25               # bn3_3 gamma/beta (lanes 0:96)
_NROWS = 26


# --------------------------------------------------------------------------- #
# kernel
# --------------------------------------------------------------------------- #
def _inception_kernel(N, L, x_ref, prm_ref, w3b_ref, out_ref):
    """Fused InceptionA forward (single invocation, channels-last, N = B*L rows).

    x_ref  : (N, 1)        raw input column (flattened B*L)
    prm_ref: (26, 128)     packed folded/pre-contracted per-channel parameters
    w3b_ref: (384, 128)    bf16 im2col weights of branch3x3_3 (Cin/Cout padded 96->128)
    out_ref: (N, 288)      contiguous [h1(64) | h5(64) | h3(96) | hp(64)]
    """
    inv_n = 1.0 / N
    prm = prm_ref[...]

    def row(i):
        return prm[i:i + 1, :]                                   # (1, 128)

    # single data input, lane-broadcast once and reused by every branch
    xb = jnp.broadcast_to(x_ref[...], (N, LANES))

    # hoisted boundary helpers: one (N,1) position index + one (N,1) mask per
    # shift, shared by both K-tap convs, the pooling and the 96->96 conv.
    ri = jax.lax.broadcasted_iota(jnp.int32, (N, 1), 0)
    l_idx = (ri & (L - 1)) if (L & (L - 1)) == 0 else (ri % L)
    xs, ok = {}, {}
    for s in (-2, -1, 1, 2):
        xs[s] = pltpu.roll(xb, shift=(-s) % N, axis=0)
        ok[s] = (l_idx >= -s) if s < 0 else (l_idx < L - s)

    def bn(h, gi, bi):
        # training-mode BatchNorm1d over (batch, length); centred two-pass variance.
        m = jnp.sum(h, axis=0, keepdims=True) * inv_n
        d = h - m
        v = jnp.sum(d * d, axis=0, keepdims=True) * inv_n
        return d * (jax.lax.rsqrt(v + EPS) * row(gi)) + row(bi)

    # branch1x1: conv1x1 + BN folded to one FMA (lanes 0:64, zeros elsewhere)
    h1 = xb * row(_S1) + row(_T1)

    # branch5x5: 1x1+BN pre-contracted into the 5-tap weights -> pure VPU K-tap
    # scalar conv.  Channels live in lanes 64:128 so [h1|h5] packs with one add.
    h5c = xb * row(_WS5 + 2) + row(_WT5 + 2)                     # centre tap (always valid)
    for k, s in ((0, -2), (1, -1), (3, 1), (4, 2)):
        h5c = h5c + jnp.where(ok[s], xs[s] * row(_WS5 + k) + row(_WT5 + k), 0.0)
    h5 = bn(h5c, _G22, _B22)

    # branch3x3 first conv: same pre-contraction (96 channels, lanes 0:96)
    h3c = xb * row(_W3S + 1) + row(_W3T + 1)
    for k, s in ((0, -1), (2, 1)):
        h3c = h3c + jnp.where(ok[s], xs[s] * row(_W3S + k) + row(_W3T + k), 0.0)
    h3a = bn(h3c, _G32, _B32)

    # branch3x3 second conv: the only dense conv (96->96, 3 taps) -> one bf16
    # im2col matmul on the MXU; 128-aligned pieces make the lane concat free.
    def win(s):
        return jnp.where(ok[s], pltpu.roll(h3a, shift=(-s) % N, axis=0), 0.0)

    cat = jnp.concatenate([win(-1).astype(jnp.bfloat16),
                           h3a.astype(jnp.bfloat16),
                           win(1).astype(jnp.bfloat16)], axis=-1)     # (N, 384)
    h3 = bn(jnp.dot(cat, w3b_ref[...], preferred_element_type=jnp.float32),
            _G33, _B33)

    # branch_pool: avg_pool1d(3,1,1) in-register (reuses the +-1 shifts/masks);
    # 1x1+BN folded into row(_SP) (already divided by 3) and row(_TP).
    pooled3 = jnp.where(ok[-1], xs[-1], 0.0) + xb + jnp.where(ok[1], xs[1], 0.0)
    hp = pooled3 * row(_SP) + row(_TP)

    # lane-dense contiguous 288-channel output: [h1|h5] then [h3|hp]
    out_ref[:, 0:128] = h1 + h5
    out_ref[:, 128:288] = jnp.concatenate([h3[:, :96], hp[:, :64]], axis=-1)


# --------------------------------------------------------------------------- #
# parameter construction / packing
# --------------------------------------------------------------------------- #
def init_params(key):
    """Deterministic parameters with the same shapes as the PyTorch module.

    BN affine params are randomised (instead of PyTorch's ones/zeros default)
    so the folded beta/shift propagation paths are exercised by the check.
    """
    ks = jax.random.split(key, 28)

    def u(k, shape, fan_in):
        bound = 1.0 / (fan_in ** 0.5)
        return jax.random.uniform(k, shape, jnp.float32, -bound, bound)

    def g(k, n):
        return jax.random.uniform(k, (n,), jnp.float32, 0.5, 1.5)

    def b(k, n):
        return jax.random.uniform(k, (n,), jnp.float32, -0.5, 0.5)

    p = {}
    p["w1"] = u(ks[0], (64, 1, 1), 1);         p["b1"] = u(ks[1], (64,), 1)
    p["g1"] = g(ks[2], 64);                    p["be1"] = b(ks[3], 64)
    p["w21"] = u(ks[4], (48, 1, 1), 1);        p["b21"] = u(ks[5], (48,), 1)
    p["g21"] = g(ks[6], 48);                   p["be21"] = b(ks[7], 48)
    p["w22"] = u(ks[8], (64, 48, 5), 48 * 5);  p["b22"] = u(ks[9], (64,), 48 * 5)
    p["g22"] = g(ks[10], 64);                  p["be22"] = b(ks[11], 64)
    p["w31"] = u(ks[12], (64, 1, 1), 1);       p["b31"] = u(ks[13], (64,), 1)
    p["g31"] = g(ks[14], 64);                  p["be31"] = b(ks[15], 64)
    p["w32"] = u(ks[16], (96, 64, 3), 64 * 3); p["b32"] = u(ks[17], (96,), 64 * 3)
    p["g32"] = g(ks[18], 96);                  p["be32"] = b(ks[19], 96)
    p["w33"] = u(ks[20], (96, 96, 3), 96 * 3); p["b33"] = u(ks[21], (96,), 96 * 3)
    p["g33"] = g(ks[22], 96);                  p["be33"] = b(ks[23], 96)
    p["wp"] = u(ks[24], (64, 1, 1), 1);        p["bp"] = u(ks[25], (64,), 1)
    p["gp"] = g(ks[26], 64);                   p["bep"] = b(ks[27], 64)
    return p


def _pack_params(p, mean_x, var_x, mean_p, var_p):
    """Fold 1x1-conv+BN affines, pre-contract them into the K-tap conv weights,
    absorb the mean-centering constants, and pack everything into two arrays."""
    f32 = jnp.float32

    def scale_1x1(w, g, var):
        # BN(x*w + b) = (x - mean)*w*g*rsqrt(var*w^2 + eps) + beta  (b cancels)
        w = w.reshape(-1).astype(f32)
        return w * g.astype(f32) * jax.lax.rsqrt(var * w * w + EPS)

    s1 = scale_1x1(p["w1"], p["g1"], var_x);  t1 = p["be1"].astype(f32) - mean_x * s1
    s5 = scale_1x1(p["w21"], p["g21"], var_x); t5 = p["be21"].astype(f32) - mean_x * s5
    s3 = scale_1x1(p["w31"], p["g31"], var_x); t3 = p["be31"].astype(f32) - mean_x * s3
    sp = scale_1x1(p["wp"], p["gp"], var_p);   tp = p["bep"].astype(f32) - mean_p * sp
    sp3 = sp * (1.0 / 3.0)                     # fold the avg_pool 1/3 into the scale

    # pre-contract the K-tap conv weights with the folded 1x1 affines over Cin:
    #   ws[k,d] = sum_c s[c]*W[d,c,k]   wt[k,d] = sum_c t[c]*W[d,c,k]
    w22 = p["w22"].astype(f32)                                  # (64, 48, 5)
    ws5 = jnp.einsum("dck,c->kd", w22, s5)                      # (5, 64)
    wt5 = jnp.einsum("dck,c->kd", w22, t5)                      # (5, 64)
    w32 = p["w32"].astype(f32)                                  # (96, 64, 3)
    w3s = jnp.einsum("dck,c->kd", w32, s3)                      # (3, 96)
    w3t = jnp.einsum("dck,c->kd", w32, t3)                      # (3, 96)

    def lane(v, off):
        return jnp.zeros((LANES,), f32).at[off:off + v.shape[0]].set(v.astype(f32))

    rows = [lane(s1, 0), lane(t1, 0), lane(sp3, 0), lane(tp, 0)]
    rows += [lane(ws5[k], 64) for k in range(5)]
    rows += [lane(wt5[k], 64) for k in range(5)]
    rows += [lane(w3s[k], 0) for k in range(3)]
    rows += [lane(w3t[k], 0) for k in range(3)]
    rows += [lane(p["g22"], 64), lane(p["be22"], 64),
             lane(p["g32"], 0), lane(p["be32"], 0),
             lane(p["g33"], 0), lane(p["be33"], 0)]
    prm = jnp.stack(rows)                                       # (26, 128)
    assert prm.shape[0] == _NROWS

    # branch3x3_3 im2col weights: (Cout,Cin,K) -> (K,Cin_pad,Cout_pad) -> (384,128) bf16
    w33 = jnp.transpose(p["w33"].astype(f32), (2, 1, 0))        # (3, 96, 96)
    w33 = jnp.pad(w33, ((0, 0), (0, LANES - 96), (0, LANES - 96)))
    w3b = w33.reshape(3 * LANES, LANES).astype(jnp.bfloat16)

    # Conv biases (b1/b21/b22/b31/b32/b33/bp) cancel exactly inside training-mode BN.
    return prm, w3b


# --------------------------------------------------------------------------- #
# wrapper
# --------------------------------------------------------------------------- #
def _vmem_limit_bytes():
    # v5e/v6e have 128 MiB physical VMEM, v7x has 64 MiB; the scoped default
    # (16-32 MiB) leaves most of it unused.  Use ~3/4 of physical capacity.
    cap = 64 * 1024 * 1024
    try:
        cap = int(getattr(pltpu.get_tpu_info(), "vmem_capacity_bytes", cap))
    except Exception:
        pass
    return max(32 * 1024 * 1024, (cap * 3) // 4)


def inception_a(x_ncl, params):
    """Forward pass.  x_ncl: (B, 1, L) float32 -> (B, 288, L) float32."""
    B, cin, L = x_ncl.shape
    assert cin == 1
    N = B * L
    x2 = x_ncl[:, 0, :].astype(jnp.float32)                      # (B, L) compact

    # tiny scalar batch statistics (fused XLA reductions over the compact input);
    # everything else (centering, pooling) happens in-register inside the kernel.
    mean_x = jnp.mean(x2)
    var_x = jnp.mean(jnp.square(x2 - mean_x))
    xp = jnp.pad(x2, ((0, 0), (1, 1)))
    pooled = (xp[:, 0:L] + xp[:, 1:L + 1] + xp[:, 2:L + 2]) * (1.0 / 3.0)
    mean_p = jnp.mean(pooled)
    var_p = jnp.mean(jnp.square(pooled - mean_p))

    prm, w3b = _pack_params(params, mean_x, var_x, mean_p, var_p)

    kernel = functools.partial(_inception_kernel, N, L)
    vmem = pl.BlockSpec(memory_space=pltpu.MemorySpace.VMEM)

    out = pl.pallas_call(
        kernel,
        out_shape=jax.ShapeDtypeStruct((N, 288), jnp.float32),
        in_specs=[vmem, vmem, vmem],
        out_specs=vmem,
        compiler_params=pltpu.CompilerParams(vmem_limit_bytes=_vmem_limit_bytes()),
    )(x2.reshape(N, 1), prm, w3b)

    # contiguous 288-channel kernel output; only one NCL transpose left to XLA
    return jnp.transpose(out.reshape(B, L, 288), (0, 2, 1))


# --------------------------------------------------------------------------- #
# pure-JAX reference (original, unfused math) for correctness checking
# --------------------------------------------------------------------------- #
def inception_a_ref(x_ncl, p):
    B, _, L = x_ncl.shape
    x = jnp.transpose(x_ncl, (0, 2, 1)).astype(jnp.float32)      # (B, L, 1)

    def bn(h, g, b):
        m = jnp.mean(h, axis=(0, 1), keepdims=True)
        v = jnp.mean((h - m) ** 2, axis=(0, 1), keepdims=True)
        return (h - m) / jnp.sqrt(v + EPS) * g.reshape(1, 1, -1) + b.reshape(1, 1, -1)

    def conv1x1(h, w, b):
        return h * w.reshape(1, 1, -1) + b.reshape(1, 1, -1)

    def convK(h, w, b):
        K = w.shape[-1]
        pad = (K - 1) // 2
        wk = jnp.transpose(w, (2, 1, 0))                         # (K, Cin, Cout)
        hp = jnp.pad(h, ((0, 0), (pad, pad), (0, 0)))
        acc = sum(jnp.einsum("blc,cd->bld", hp[:, k:k + L, :], wk[k]) for k in range(K))
        return acc + b.reshape(1, 1, -1)

    h1 = bn(conv1x1(x, p["w1"], p["b1"]), p["g1"], p["be1"])
    h5 = bn(conv1x1(x, p["w21"], p["b21"]), p["g21"], p["be21"])
    h5 = bn(convK(h5, p["w22"], p["b22"]), p["g22"], p["be22"])
    h3 = bn(conv1x1(x, p["w31"], p["b31"]), p["g31"], p["be31"])
    h3 = bn(convK(h3, p["w32"], p["b32"]), p["g32"], p["be32"])
    h3 = bn(convK(h3, p["w33"], p["b33"]), p["g33"], p["be33"])
    xp = jnp.pad(x, ((0, 0), (1, 1), (0, 0)))
    pooled = (xp[:, 0:L, :] + xp[:, 1:1 + L, :] + xp[:, 2:2 + L, :]) / 3.0
    hpool = bn(conv1x1(pooled, p["wp"], p["bp"]), p["gp"], p["bep"])
    out = jnp.concatenate([h1, h5, h3, hpool], axis=-1)
    return jnp.transpose(out, (0, 2, 1))


if __name__ == "__main__":
    B, L = 2, 64
    key = jax.random.PRNGKey(0)
    kx, kp = jax.random.split(key)
    x = jax.random.normal(kx, (B, 1, L), jnp.float32)
    params = init_params(kp)

    fwd = jax.jit(inception_a)
    out = jax.block_until_ready(fwd(x, params))
    assert out.shape == (B, 288, L), out.shape

    ref = inception_a_ref(x, params)
    max_err = float(jnp.max(jnp.abs(out - ref)))
    # the single remaining (96->96) matmul runs in bf16, so allow ~1e-2 error
    if not bool(jnp.allclose(out, ref, atol=2e-2, rtol=2e-2)):
        raise SystemExit(f"kernel/reference mismatch, max abs err = {max_err}")

    print("KERNEL_OK")
</pallas_src>

<mosaic_0001>
module attributes {stable_mosaic.version = 11 : i64} {
  func.func @_inception_kernel(%arg0: memref<128x1xf32, #tpu.memory_space<vmem>>, %arg1: memref<26x128xf32, #tpu.memory_space<vmem>>, %arg2: memref<384x128xbf16, #tpu.memory_space<vmem>>, %arg3: memref<128x288xf32, #tpu.memory_space<vmem>>) attributes {dimension_semantics = [], scalar_prefetch = 0 : i64, scratch_operands = 0 : i64, tpu.core_type = #tpu.core_type<tc>} {
    %c0 = arith.constant 0 : index
    %c0_0 = arith.constant 0 : index
    %0 = vector.load %arg1[%c0, %c0_0] : memref<26x128xf32, #tpu.memory_space<vmem>>, vector<26x128xf32>
    %c0_1 = arith.constant 0 : index
    %c0_2 = arith.constant 0 : index
    %1 = vector.load %arg0[%c0_1, %c0_2] : memref<128x1xf32, #tpu.memory_space<vmem>>, vector<128x1xf32>
    %2 = vector.shape_cast %1 : vector<128x1xf32> to vector<128x1xf32>
    %3 = vector.broadcast %2 : vector<128x1xf32> to vector<128x128xf32>
    %4 = tpu.iota {dimensions = array<i32: 0>} : vector<128x1xi32>
    %c63_i32 = arith.constant 63 : i32
    %5 = vector.broadcast %c63_i32 : i32 to vector<128x1xi32>
    %6 = arith.andi %4, %5 : vector<128x1xi32>
    %c2_i32 = arith.constant 2 : i32
    %7 = tpu.dynamic_rotate %3 by %c2_i32 dim 0 : vector<128x128xf32>, i32 -> vector<128x128xf32>
    %c2_i32_3 = arith.constant 2 : i32
    %8 = vector.broadcast %c2_i32_3 : i32 to vector<128x1xi32>
    %9 = arith.cmpi sge, %6, %8 : vector<128x1xi32>
    %c1_i32 = arith.constant 1 : i32
    %10 = tpu.dynamic_rotate %3 by %c1_i32 dim 0 : vector<128x128xf32>, i32 -> vector<128x128xf32>
    %c1_i32_4 = arith.constant 1 : i32
    %11 = vector.broadcast %c1_i32_4 : i32 to vector<128x1xi32>
    %12 = arith.cmpi sge, %6, %11 : vector<128x1xi32>
    %c127_i32 = arith.constant 127 : i32
    %13 = tpu.dynamic_rotate %3 by %c127_i32 dim 0 : vector<128x128xf32>, i32 -> vector<128x128xf32>
    %c63_i32_5 = arith.constant 63 : i32
    %14 = vector.broadcast %c63_i32_5 : i32 to vector<128x1xi32>
    %15 = arith.cmpi slt, %6, %14 : vector<128x1xi32>
    %c126_i32 = arith.constant 126 : i32
    %16 = tpu.dynamic_rotate %3 by %c126_i32 dim 0 : vector<128x128xf32>, i32 -> vector<128x128xf32>
    %c62_i32 = arith.constant 62 : i32
    %17 = vector.broadcast %c62_i32 : i32 to vector<128x1xi32>
    %18 = arith.cmpi slt, %6, %17 : vector<128x1xi32>
    %19 = vector.extract_strided_slice %0 {offsets = [0, 0], sizes = [1, 128], strides = [1, 1]} : vector<26x128xf32> to vector<1x128xf32>
    %20 = vector.broadcast %19 : vector<1x128xf32> to vector<128x128xf32>
    %21 = arith.mulf %3, %20 : vector<128x128xf32>
    %22 = vector.extract_strided_slice %0 {offsets = [1, 0], sizes = [1, 128], strides = [1, 1]} : vector<26x128xf32> to vector<1x128xf32>
    %23 = vector.broadcast %22 : vector<1x128xf32> to vector<128x128xf32>
    %24 = arith.addf %21, %23 : vector<128x128xf32>
    %25 = vector.extract_strided_slice %0 {offsets = [6, 0], sizes = [1, 128], strides = [1, 1]} : vector<26x128xf32> to vector<1x128xf32>
    %26 = vector.broadcast %25 : vector<1x128xf32> to vector<128x128xf32>
    %27 = arith.mulf %3, %26 : vector<128x128xf32>
    %28 = vector.extract_strided_slice %0 {offsets = [11, 0], sizes = [1, 128], strides = [1, 1]} : vector<26x128xf32> to vector<1x128xf32>
    %29 = vector.broadcast %28 : vector<1x128xf32> to vector<128x128xf32>
    %30 = arith.addf %27, %29 : vector<128x128xf32>
    %31 = vector.extract_strided_slice %0 {offsets = [4, 0], sizes = [1, 128], strides = [1, 1]} : vector<26x128xf32> to vector<1x128xf32>
    %32 = vector.broadcast %31 : vector<1x128xf32> to vector<128x128xf32>
    %33 = arith.mulf %7, %32 : vector<128x128xf32>
    %34 = vector.extract_strided_slice %0 {offsets = [9, 0], sizes = [1, 128], strides = [1, 1]} : vector<26x128xf32> to vector<1x128xf32>
    %35 = vector.broadcast %34 : vector<1x128xf32> to vector<128x128xf32>
    %36 = arith.addf %33, %35 : vector<128x128xf32>
    %cst = arith.constant 0.000000e+00 : f32
    %37 = vector.shape_cast %9 : vector<128x1xi1> to vector<128x1xi1>
    %38 = vector.broadcast %37 : vector<128x1xi1> to vector<128x128xi1>
    %39 = vector.broadcast %cst : f32 to vector<128x128xf32>
    %40 = arith.select %38, %36, %39 : vector<128x128xi1>, vector<128x128xf32>
    %41 = arith.addf %30, %40 : vector<128x128xf32>
    %42 = vector.extract_strided_slice %0 {offsets = [5, 0], sizes = [1, 128], strides = [1, 1]} : vector<26x128xf32> to vector<1x128xf32>
    %43 = vector.broadcast %42 : vector<1x128xf32> to vector<128x128xf32>
    %44 = arith.mulf %10, %43 : vector<128x128xf32>
    %45 = vector.extract_strided_slice %0 {offsets = [10, 0], sizes = [1, 128], strides = [1, 1]} : vector<26x128xf32> to vector<1x128xf32>
    %46 = vector.broadcast %45 : vector<1x128xf32> to vector<128x128xf32>
    %47 = arith.addf %44, %46 : vector<128x128xf32>
    %cst_6 = arith.constant 0.000000e+00 : f32
    %48 = vector.shape_cast %12 : vector<128x1xi1> to vector<128x1xi1>
    %49 = vector.broadcast %48 : vector<128x1xi1> to vector<128x128xi1>
    %50 = vector.broadcast %cst_6 : f32 to vector<128x128xf32>
    %51 = arith.select %49, %47, %50 : vector<128x128xi1>, vector<128x128xf32>
    %52 = arith.addf %41, %51 : vector<128x128xf32>
    %53 = vector.extract_strided_slice %0 {offsets = [7, 0], sizes = [1, 128], strides = [1, 1]} : vector<26x128xf32> to vector<1x128xf32>
    %54 = vector.broadcast %53 : vector<1x128xf32> to vector<128x128xf32>
    %55 = arith.mulf %13, %54 : vector<128x128xf32>
    %56 = vector.extract_strided_slice %0 {offsets = [12, 0], sizes = [1, 128], strides = [1, 1]} : vector<26x128xf32> to vector<1x128xf32>
    %57 = vector.broadcast %56 : vector<1x128xf32> to vector<128x128xf32>
    %58 = arith.addf %55, %57 : vector<128x128xf32>
    %cst_7 = arith.constant 0.000000e+00 : f32
    %59 = vector.shape_cast %15 : vector<128x1xi1> to vector<128x1xi1>
    %60 = vector.broadcast %59 : vector<128x1xi1> to vector<128x128xi1>
    %61 = vector.broadcast %cst_7 : f32 to vector<128x128xf32>
    %62 = arith.select %60, %58, %61 : vector<128x128xi1>, vector<128x128xf32>
    %63 = arith.addf %52, %62 : vector<128x128xf32>
    %64 = vector.extract_strided_slice %0 {offsets = [8, 0], sizes = [1, 128], strides = [1, 1]} : vector<26x128xf32> to vector<1x128xf32>
    %65 = vector.broadcast %64 : vector<1x128xf32> to vector<128x128xf32>
    %66 = arith.mulf %16, %65 : vector<128x128xf32>
    %67 = vector.extract_strided_slice %0 {offsets = [13, 0], sizes = [1, 128], strides = [1, 1]} : vector<26x128xf32> to vector<1x128xf32>
    %68 = vector.broadcast %67 : vector<1x128xf32> to vector<128x128xf32>
    %69 = arith.addf %66, %68 : vector<128x128xf32>
    %cst_8 = arith.constant 0.000000e+00 : f32
    %70 = vector.shape_cast %18 : vector<128x1xi1> to vector<128x1xi1>
    %71 = vector.broadcast %70 : vector<128x1xi1> to vector<128x128xi1>
    %72 = vector.broadcast %cst_8 : f32 to vector<128x128xf32>
    %73 = arith.select %71, %69, %72 : vector<128x128xi1>, vector<128x128xf32>
    %74 = arith.addf %63, %73 : vector<128x128xf32>
    %cst_9 = arith.constant dense<0.000000e+00> : vector<128xf32>
    %75 = vector.multi_reduction <add>, %74, %cst_9 [0] : vector<128x128xf32> to vector<128xf32>
    %76 = vector.shape_cast %75 : vector<128xf32> to vector<1x128xf32>
    %cst_10 = arith.constant 7.812500e-03 : f32
    %77 = vector.broadcast %cst_10 : f32 to vector<1x128xf32>
    %78 = arith.mulf %76, %77 : vector<1x128xf32>
    %79 = vector.broadcast %78 : vector<1x128xf32> to vector<128x128xf32>
    %80 = arith.subf %74, %79 : vector<128x128xf32>
    %81 = arith.mulf %80, %80 : vector<128x128xf32>
    %cst_11 = arith.constant dense<0.000000e+00> : vector<128xf32>
    %82 = vector.multi_reduction <add>, %81, %cst_11 [0] : vector<128x128xf32> to vector<128xf32>
    %83 = vector.shape_cast %82 : vector<128xf32> to vector<1x128xf32>
    %cst_12 = arith.constant 7.812500e-03 : f32
    %84 = vector.broadcast %cst_12 : f32 to vector<1x128xf32>
    %85 = arith.mulf %83, %84 : vector<1x128xf32>
    %cst_13 = arith.constant 9.99999974E-6 : f32
    %86 = vector.broadcast %cst_13 : f32 to vector<1x128xf32>
    %87 = arith.addf %85, %86 : vector<1x128xf32>
    %88 = math.rsqrt %87 : vector<1x128xf32>
    %89 = vector.extract_strided_slice %0 {offsets = [20, 0], sizes = [1, 128], strides = [1, 1]} : vector<26x128xf32> to vector<1x128xf32>
    %90 = arith.mulf %88, %89 : vector<1x128xf32>
    %91 = vector.broadcast %90 : vector<1x128xf32> to vector<128x128xf32>
    %92 = arith.mulf %80, %91 : vector<128x128xf32>
    %93 = vector.extract_strided_slice %0 {offsets = [21, 0], sizes = [1, 128], strides = [1, 1]} : vector<26x128xf32> to vector<1x128xf32>
    %94 = vector.broadcast %93 : vector<1x128xf32> to vector<128x128xf32>
    %95 = arith.addf %92, %94 : vector<128x128xf32>
    %96 = vector.extract_strided_slice %0 {offsets = [15, 0], sizes = [1, 128], strides = [1, 1]} : vector<26x128xf32> to vector<1x128xf32>
    %97 = vector.broadcast %96 : vector<1x128xf32> to vector<128x128xf32>
    %98 = arith.mulf %3, %97 : vector<128x128xf32>
    %99 = vector.extract_strided_slice %0 {offsets = [18, 0], sizes = [1, 128], strides = [1, 1]} : vector<26x128xf32> to vector<1x128xf32>
    %100 = vector.broadcast %99 : vector<1x128xf32> to vector<128x128xf32>
    %101 = arith.addf %98, %100 : vector<128x128xf32>
    %102 = vector.extract_strided_slice %0 {offsets = [14, 0], sizes = [1, 128], strides = [1, 1]} : vector<26x128xf32> to vector<1x128xf32>
    %103 = vector.broadcast %102 : vector<1x128xf32> to vector<128x128xf32>
    %104 = arith.mulf %10, %103 : vector<128x128xf32>
    %105 = vector.extract_strided_slice %0 {offsets = [17, 0], sizes = [1, 128], strides = [1, 1]} : vector<26x128xf32> to vector<1x128xf32>
    %106 = vector.broadcast %105 : vector<1x128xf32> to vector<128x128xf32>
    %107 = arith.addf %104, %106 : vector<128x128xf32>
    %cst_14 = arith.constant 0.000000e+00 : f32
    %108 = vector.shape_cast %12 : vector<128x1xi1> to vector<128x1xi1>
    %109 = vector.broadcast %108 : vector<128x1xi1> to vector<128x128xi1>
    %110 = vector.broadcast %cst_14 : f32 to vector<128x128xf32>
    %111 = arith.select %109, %107, %110 : vector<128x128xi1>, vector<128x128xf32>
    %112 = arith.addf %101, %111 : vector<128x128xf32>
    %113 = vector.extract_strided_slice %0 {offsets = [16, 0], sizes = [1, 128], strides = [1, 1]} : vector<26x128xf32> to vector<1x128xf32>
    %114 = vector.broadcast %113 : vector<1x128xf32> to vector<128x128xf32>
    %115 = arith.mulf %13, %114 : vector<128x128xf32>
    %116 = vector.extract_strided_slice %0 {offsets = [19, 0], sizes = [1, 128], strides = [1, 1]} : vector<26x128xf32> to vector<1x128xf32>
    %117 = vector.broadcast %116 : vector<1x128xf32> to vector<128x128xf32>
    %118 = arith.addf %115, %117 : vector<128x128xf32>
    %cst_15 = arith.constant 0.000000e+00 : f32
    %119 = vector.shape_cast %15 : vector<128x1xi1> to vector<128x1xi1>
    %120 = vector.broadcast %119 : vector<128x1xi1> to vector<128x128xi1>
    %121 = vector.broadcast %cst_15 : f32 to vector<128x128xf32>
    %122 = arith.select %120, %118, %121 : vector<128x128xi1>, vector<128x128xf32>
    %123 = arith.addf %112, %122 : vector<128x128xf32>
    %cst_16 = arith.constant dense<0.000000e+00> : vector<128xf32>
    %124 = vector.multi_reduction <add>, %123, %cst_16 [0] : vector<128x128xf32> to vector<128xf32>
    %125 = vector.shape_cast %124 : vector<128xf32> to vector<1x128xf32>
    %cst_17 = arith.constant 7.812500e-03 : f32
    %126 = vector.broadcast %cst_17 : f32 to vector<1x128xf32>
    %127 = arith.mulf %125, %126 : vector<1x128xf32>
    %128 = vector.broadcast %127 : vector<1x128xf32> to vector<128x128xf32>
    %129 = arith.subf %123, %128 : vector<128x128xf32>
    %130 = arith.mulf %129, %129 : vector<128x128xf32>
    %cst_18 = arith.constant dense<0.000000e+00> : vector<128xf32>
    %131 = vector.multi_reduction <add>, %130, %cst_18 [0] : vector<128x128xf32> to vector<128xf32>
    %132 = vector.shape_cast %131 : vector<128xf32> to vector<1x128xf32>
    %cst_19 = arith.constant 7.812500e-03 : f32
    %133 = vector.broadcast %cst_19 : f32 to vector<1x128xf32>
    %134 = arith.mulf %132, %133 : vector<1x128xf32>
    %cst_20 = arith.constant 9.99999974E-6 : f32
    %135 = vector.broadcast %cst_20 : f32 to vector<1x128xf32>
    %136 = arith.addf %134, %135 : vector<1x128xf32>
    %137 = math.rsqrt %136 : vector<1x128xf32>
    %138 = vector.extract_strided_slice %0 {offsets = [22, 0], sizes = [1, 128], strides = [1, 1]} : vector<26x128xf32> to vector<1x128xf32>
    %139 = arith.mulf %137, %138 : vector<1x128xf32>
    %140 = vector.broadcast %139 : vector<1x128xf32> to vector<128x128xf32>
    %141 = arith.mulf %129, %140 : vector<128x128xf32>
    %142 = vector.extract_strided_slice %0 {offsets = [23, 0], sizes = [1, 128], strides = [1, 1]} : vector<26x128xf32> to vector<1x128xf32>
    %143 = vector.broadcast %142 : vector<1x128xf32> to vector<128x128xf32>
    %144 = arith.addf %141, %143 : vector<128x128xf32>
    %c1_i32_21 = arith.constant 1 : i32
    %145 = tpu.dynamic_rotate %144 by %c1_i32_21 dim 0 : vector<128x128xf32>, i32 -> vector<128x128xf32>
    %cst_22 = arith.constant 0.000000e+00 : f32
    %146 = vector.shape_cast %12 : vector<128x1xi1> to vector<128x1xi1>
    %147 = vector.broadcast %146 : vector<128x1xi1> to vector<128x128xi1>
    %148 = vector.broadcast %cst_22 : f32 to vector<128x128xf32>
    %149 = arith.select %147, %145, %148 : vector<128x128xi1>, vector<128x128xf32>
    %150 = arith.truncf %149 : vector<128x128xf32> to vector<128x128xbf16>
    %151 = arith.truncf %144 : vector<128x128xf32> to vector<128x128xbf16>
    %c127_i32_23 = arith.constant 127 : i32
    %152 = tpu.dynamic_rotate %144 by %c127_i32_23 dim 0 : vector<128x128xf32>, i32 -> vector<128x128xf32>
    %cst_24 = arith.constant 0.000000e+00 : f32
    %153 = vector.shape_cast %15 : vector<128x1xi1> to vector<128x1xi1>
    %154 = vector.broadcast %153 : vector<128x1xi1> to vector<128x128xi1>
    %155 = vector.broadcast %cst_24 : f32 to vector<128x128xf32>
    %156 = arith.select %154, %152, %155 : vector<128x128xi1>, vector<128x128xf32>
    %157 = arith.truncf %156 : vector<128x128xf32> to vector<128x128xbf16>
    %158 = tpu.concatenate %150, %151, %157 in 1 : vector<128x128xbf16>, vector<128x128xbf16>, vector<128x128xbf16> -> vector<128x384xbf16>
    %c0_25 = arith.constant 0 : index
    %c0_26 = arith.constant 0 : index
    %159 = vector.load %arg2[%c0_25, %c0_26] : memref<384x128xbf16, #tpu.memory_space<vmem>>, vector<384x128xbf16>
    %cst_27 = arith.constant dense<0.000000e+00> : vector<128x128xf32>
    %160 = tpu.matmul %158, %159, %cst_27 {dimension_numbers = #tpu.dot_dimension_numbers<[1], [0], [0], [1], [0, 0, 1, 1], [], []>} : vector<128x384xbf16>, vector<384x128xbf16>, vector<128x128xf32> -> vector<128x128xf32>
    %cst_28 = arith.constant dense<0.000000e+00> : vector<128xf32>
    %161 = vector.multi_reduction <add>, %160, %cst_28 [0] : vector<128x128xf32> to vector<128xf32>
    %162 = vector.shape_cast %161 : vector<128xf32> to vector<1x128xf32>
    %cst_29 = arith.constant 7.812500e-03 : f32
    %163 = vector.broadcast %cst_29 : f32 to vector<1x128xf32>
    %164 = arith.mulf %162, %163 : vector<1x128xf32>
    %165 = vector.broadcast %164 : vector<1x128xf32> to vector<128x128xf32>
    %166 = arith.subf %160, %165 : vector<128x128xf32>
    %167 = arith.mulf %166, %166 : vector<128x128xf32>
    %cst_30 = arith.constant dense<0.000000e+00> : vector<128xf32>
    %168 = vector.multi_reduction <add>, %167, %cst_30 [0] : vector<128x128xf32> to vector<128xf32>
    %169 = vector.shape_cast %168 : vector<128xf32> to vector<1x128xf32>
    %cst_31 = arith.constant 7.812500e-03 : f32
    %170 = vector.broadcast %cst_31 : f32 to vector<1x128xf32>
    %171 = arith.mulf %169, %170 : vector<1x128xf32>
    %cst_32 = arith.constant 9.99999974E-6 : f32
    %172 = vector.broadcast %cst_32 : f32 to vector<1x128xf32>
    %173 = arith.addf %171, %172 : vector<1x128xf32>
    %174 = math.rsqrt %173 : vector<1x128xf32>
    %175 = vector.extract_strided_slice %0 {offsets = [24, 0], sizes = [1, 128], strides = [1, 1]} : vector<26x128xf32> to vector<1x128xf32>
    %176 = arith.mulf %174, %175 : vector<1x128xf32>
    %177 = vector.broadcast %176 : vector<1x128xf32> to vector<128x128xf32>
    %178 = arith.mulf %166, %177 : vector<128x128xf32>
    %179 = vector.extract_strided_slice %0 {offsets = [25, 0], sizes = [1, 128], strides = [1, 1]} : vector<26x128xf32> to vector<1x128xf32>
    %180 = vector.broadcast %179 : vector<1x128xf32> to vector<128x128xf32>
    %181 = arith.addf %178, %180 : vector<128x128xf32>
    %cst_33 = arith.constant 0.000000e+00 : f32
    %182 = vector.shape_cast %12 : vector<128x1xi1> to vector<128x1xi1>
    %183 = vector.broadcast %182 : vector<128x1xi1> to vector<128x128xi1>
    %184 = vector.broadcast %cst_33 : f32 to vector<128x128xf32>
    %185 = arith.select %183, %10, %184 : vector<128x128xi1>, vector<128x128xf32>
    %186 = arith.addf %185, %3 : vector<128x128xf32>
    %cst_34 = arith.constant 0.000000e+00 : f32
    %187 = vector.shape_cast %15 : vector<128x1xi1> to vector<128x1xi1>
    %188 = vector.broadcast %187 : vector<128x1xi1> to vector<128x128xi1>
    %189 = vector.broadcast %cst_34 : f32 to vector<128x128xf32>
    %190 = arith.select %188, %13, %189 : vector<128x128xi1>, vector<128x128xf32>
    %191 = arith.addf %186, %190 : vector<128x128xf32>
    %192 = vector.extract_strided_slice %0 {offsets = [2, 0], sizes = [1, 128], strides = [1, 1]} : vector<26x128xf32> to vector<1x128xf32>
    %193 = vector.broadcast %192 : vector<1x128xf32> to vector<128x128xf32>
    %194 = arith.mulf %191, %193 : vector<128x128xf32>
    %195 = vector.extract_strided_slice %0 {offsets = [3, 0], sizes = [1, 128], strides = [1, 1]} : vector<26x128xf32> to vector<1x128xf32>
    %196 = vector.broadcast %195 : vector<1x128xf32> to vector<128x128xf32>
    %197 = arith.addf %194, %196 : vector<128x128xf32>
    %198 = arith.addf %24, %95 : vector<128x128xf32>
    %c0_35 = arith.constant 0 : index
    %c0_36 = arith.constant 0 : index
    %199 = vector.load %arg3[%c0_35, %c0_36] : memref<128x288xf32, #tpu.memory_space<vmem>>, vector<128x128xf32>
    tpu.vector_store %arg3[%c0_35, %c0_36], %198 {strides = array<i32>} : memref<128x288xf32, #tpu.memory_space<vmem>>, vector<128x128xf32>,
    %200 = vector.extract_strided_slice %181 {offsets = [0, 0], sizes = [128, 96], strides = [1, 1]} : vector<128x128xf32> to vector<128x96xf32>
    %201 = vector.extract_strided_slice %197 {offsets = [0, 0], sizes = [128, 64], strides = [1, 1]} : vector<128x128xf32> to vector<128x64xf32>
    %202 = tpu.concatenate %200, %201 in 1 : vector<128x96xf32>, vector<128x64xf32> -> vector<128x160xf32>
    %c0_37 = arith.constant 0 : index
    %c128 = arith.constant 128 : index
    %203 = vector.load %arg3[%c0_37, %c128] : memref<128x288xf32, #tpu.memory_space<vmem>>, vector<128x160xf32>
    tpu.vector_store %arg3[%c0_37, %c128], %202 {strides = array<i32>} : memref<128x288xf32, #tpu.memory_space<vmem>>, vector<128x160xf32>,
    return
  }
}

</mosaic_0001>

<llo_original>
// kernel: squeeze.0
$region0: #{squeeze.0}
  %s0 = inlined_call_operand.vmem [shape: f32[2,64], index: 0, kind: input, shape index: {}]
  %s1 = inlined_call_operand.vmem [shape: f32[128,1], index: 1, kind: output, shape index: {}]
  $region1: #{squeeze.0} parent=0
    #allocation0 [shape = 'u8[4096]{0}', space=vmem, size = 0x1000, scoped, tag = 'scoped mem for input reshape']
    %s3 = sshll.u32 1, 2
    %s4 = ssub.s32 %s3, 1
    %v5 = vld [vmem:[%s0] sm:%s4]
    %6 = vst [vmem:[#allocation0] sm:%s4] %v5
    %v7 = vld [vmem:[#allocation0] sm:$0x3]
    %vm8 = vcmask 7168
    %9 = vst.msk [vmem:[%s1] sm:$0x1] %vm8, %v7
    %s10 = scalar_lea.vmem %s1, 63
    %11 = vst.msk [vmem:[%s10] sm:$0x2] %vm8, %v7
    %v12 = vld [vmem:[#allocation0] sm:$0x3]
    %13 = vrot.lane.b32.xlu0 %v12, 127
    %v14 = vpop.permute.xlu0 %13
    %vm15 = vcmask 7168
    %s16 = scalar_lea.vmem %s1, 1
    %17 = vst.msk [vmem:[%s16] sm:$0x1] %vm15, %v14
    %s18 = scalar_lea.vmem %s1, 64
    %19 = vst.msk [vmem:[%s18] sm:$0x2] %vm15, %v14
    %v20 = vld [vmem:[#allocation0] sm:$0x3]
    %21 = vrot.lane.b32.xlu0 %v20, 126
    %v22 = vpop.permute.xlu0 %21
    %vm23 = vcmask 7168
    %s24 = scalar_lea.vmem %s1, 2
    %25 = vst.msk [vmem:[%s24] sm:$0x1] %vm23, %v22
    %s26 = scalar_lea.vmem %s1, 65
    %27 = vst.msk [vmem:[%s26] sm:$0x2] %vm23, %v22
    %v28 = vld [vmem:[#allocation0] sm:$0x3]
    %29 = vrot.lane.b32.xlu0 %v28, 125
    %v30 = vpop.permute.xlu0 %29
    %vm31 = vcmask 7168
    %s32 = scalar_lea.vmem %s1, 3
    %33 = vst.msk [vmem:[%s32] sm:$0x1] %vm31, %v30
    %s34 = scalar_lea.vmem %s1, 66
    %35 = vst.msk [vmem:[%s34] sm:$0x2] %vm31, %v30
    %v36 = vld [vmem:[#allocation0] sm:$0x3]
    %37 = vrot.lane.b32.xlu0 %v36, 124
    %v38 = vpop.permute.xlu0 %37
    %vm39 = vcmask 7168
    %s40 = scalar_lea.vmem %s1, 4
    %41 = vst.msk [vmem:[%s40] sm:$0x1] %vm39, %v38
    %s42 = scalar_lea.vmem %s1, 67
    %43 = vst.msk [vmem:[%s42] sm:$0x2] %vm39, %v38
    %v44 = vld [vmem:[#allocation0] sm:$0x3]
    %45 = vrot.lane.b32.xlu0 %v44, 123
    %v46 = vpop.permute.xlu0 %45
    %vm47 = vcmask 7168
    %s48 = scalar_lea.vmem %s1, 5
    %49 = vst.msk [vmem:[%s48] sm:$0x1] %vm47, %v46
    %s50 = scalar_lea.vmem %s1, 68
    %51 = vst.msk [vmem:[%s50] sm:$0x2] %vm47, %v46
    %v52 = vld [vmem:[#allocation0] sm:$0x3]
    %53 = vrot.lane.b32.xlu0 %v52, 122
    %v54 = vpop.permute.xlu0 %53
    %vm55 = vcmask 7168
    %s56 = scalar_lea.vmem %s1, 6
    %57 = vst.msk [vmem:[%s56] sm:$0x1] %vm55, %v54
    %s58 = scalar_lea.vmem %s1, 69
    %59 = vst.msk [vmem:[%s58] sm:$0x2] %vm55, %v54
    %v60 = vld [vmem:[#allocation0] sm:$0x3]
    %61 = vrot.lane.b32.xlu0 %v60, 121
    %v62 = vpop.permute.xlu0 %61
    %vm63 = vcmask 7168
    %s64 = scalar_lea.vmem %s1, 7
    %65 = vst.msk [vmem:[%s64] sm:$0x1] %vm63, %v62
    %s66 = scalar_lea.vmem %s1, 70
    %67 = vst.msk [vmem:[%s66] sm:$0x2] %vm63, %v62
    %v68 = vld [vmem:[#allocation0] sm:$0x3]
    %69 = vrot.lane.b32.xlu0 %v68, 120
    %v70 = vpop.permute.xlu0 %69
    %vm71 = vcmask 7168
    %s72 = scalar_lea.vmem %s1, 8
    %73 = vst.msk [vmem:[%s72] sm:$0x1] %vm71, %v70
    %s74 = scalar_lea.vmem %s1, 71
    %75 = vst.msk [vmem:[%s74] sm:$0x2] %vm71, %v70
    %v76 = vld [vmem:[#allocation0] sm:$0x3]
    %77 = vrot.lane.b32.xlu0 %v76, 119
    %v78 = vpop.permute.xlu0 %77
    %vm79 = vcmask 7168
    %s80 = scalar_lea.vmem %s1, 9
    %81 = vst.msk [vmem:[%s80] sm:$0x1] %vm79, %v78
    %s82 = scalar_lea.vmem %s1, 72
    %83 = vst.msk [vmem:[%s82] sm:$0x2] %vm79, %v78
    %v84 = vld [vmem:[#allocation0] sm:$0x3]
    %85 = vrot.lane.b32.xlu0 %v84, 118
    %v86 = vpop.permute.xlu0 %85
    %vm87 = vcmask 7168
    %s88 = scalar_lea.vmem %s1, 10
    %89 = vst.msk [vmem:[%s88] sm:$0x1] %vm87, %v86
    %s90 = scalar_lea.vmem %s1, 73
    %91 = vst.msk [vmem:[%s90] sm:$0x2] %vm87, %v86
    %v92 = vld [vmem:[#allocation0] sm:$0x3]
    %93 = vrot.lane.b32.xlu0 %v92, 117
    %v94 = vpop.permute.xlu0 %93
    %vm95 = vcmask 7168
    %s96 = scalar_lea.vmem %s1, 11
    %97 = vst.msk [vmem:[%s96] sm:$0x1] %vm95, %v94
    %s98 = scalar_lea.vmem %s1, 74
    %99 = vst.msk [vmem:[%s98] sm:$0x2] %vm95, %v94
    %v100 = vld [vmem:[#allocation0] sm:$0x3]
    %101 = vrot.lane.b32.xlu0 %v100, 116
    %v102 = vpop.permute.xlu0 %101
    %vm103 = vcmask 7168
    %s104 = scalar_lea.vmem %s1, 12
    %105 = vst.msk [vmem:[%s104] sm:$0x1] %vm103, %v102
    %s106 = scalar_lea.vmem %s1, 75
    %107 = vst.msk [vmem:[%s106] sm:$0x2] %vm103, %v102
    %v108 = vld [vmem:[#allocation0] sm:$0x3]
    %109 = vrot.lane.b32.xlu0 %v108, 115
    %v110 = vpop.permute.xlu0 %109
    %vm111 = vcmask 7168
    %s112 = scalar_lea.vmem %s1, 13
    %113 = vst.msk [vmem:[%s112] sm:$0x1] %vm111, %v110
    %s114 = scalar_lea.vmem %s1, 76
    %115 = vst.msk [vmem:[%s114] sm:$0x2] %vm111, %v110
    %v116 = vld [vmem:[#allocation0] sm:$0x3]
    %117 = vrot.lane.b32.xlu0 %v116, 114
    %v118 = vpop.permute.xlu0 %117
    %vm119 = vcmask 7168
    %s120 = scalar_lea.vmem %s1, 14
    %121 = vst.msk [vmem:[%s120] sm:$0x1] %vm119, %v118
    %s122 = scalar_lea.vmem %s1, 77
    %123 = vst.msk [vmem:[%s122] sm:$0x2] %vm119, %v118
    %v124 = vld [vmem:[#allocation0] sm:$0x3]
    %125 = vrot.lane.b32.xlu0 %v124, 113
    %v126 = vpop.permute.xlu0 %125
    %vm127 = vcmask 7168
    %s128 = scalar_lea.vmem %s1, 15
    %129 = vst.msk [vmem:[%s128] sm:$0x1] %vm127, %v126
    %s130 = scalar_lea.vmem %s1, 78
    %131 = vst.msk [vmem:[%s130] sm:$0x2] %vm127, %v126
    %v132 = vld [vmem:[#allocation0] sm:$0x3]
    %133 = vrot.lane.b32.xlu0 %v132, 112
    %v134 = vpop.permute.xlu0 %133
    %vm135 = vcmask 7168
    %s136 = scalar_lea.vmem %s1, 16
    %137 = vst.msk [vmem:[%s136] sm:$0x1] %vm135, %v134
    %s138 = scalar_lea.vmem %s1, 79
    %139 = vst.msk [vmem:[%s138] sm:$0x2] %vm135, %v134
    %v140 = vld [vmem:[#allocation0] sm:$0x3]
    %141 = vrot.lane.b32.xlu0 %v140, 111
    %v142 = vpop.permute.xlu0 %141
    %vm143 = vcmask 7168
    %s144 = scalar_lea.vmem %s1, 17
    %145 = vst.msk [vmem:[%s144] sm:$0x1] %vm143, %v142
    %s146 = scalar_lea.vmem %s1, 80
    %147 = vst.msk [vmem:[%s146] sm:$0x2] %vm143, %v142
    %v148 = vld [vmem:[#allocation0] sm:$0x3]
    %149 = vrot.lane.b32.xlu0 %v148, 110
    %v150 = vpop.permute.xlu0 %149
    %vm151 = vcmask 7168
    %s152 = scalar_lea.vmem %s1, 18
    %153 = vst.msk [vmem:[%s152] sm:$0x1] %vm151, %v150
    %s154 = scalar_lea.vmem %s1, 81
    %155 = vst.msk [vmem:[%s154] sm:$0x2] %vm151, %v150
    %v156 = vld [vmem:[#allocation0] sm:$0x3]
    %157 = vrot.lane.b32.xlu0 %v156, 109
    %v158 = vpop.permute.xlu0 %157
    %vm159 = vcmask 7168
    %s160 = scalar_lea.vmem %s1, 19
    %161 = vst.msk [vmem:[%s160] sm:$0x1] %vm159, %v158
    %s162 = scalar_lea.vmem %s1, 82
    %163 = vst.msk [vmem:[%s162] sm:$0x2] %vm159, %v158
    %v164 = vld [vmem:[#allocation0] sm:$0x3]
    %165 = vrot.lane.b32.xlu0 %v164, 108
    %v166 = vpop.permute.xlu0 %165
    %vm167 = vcmask 7168
    %s168 = scalar_lea.vmem %s1, 20
    %169 = vst.msk [vmem:[%s168] sm:$0x1] %vm167, %v166
    %s170 = scalar_lea.vmem %s1, 83
    %171 = vst.msk [vmem:[%s170] sm:$0x2] %vm167, %v166
    %v172 = vld [vmem:[#allocation0] sm:$0x3]
    %173 = vrot.lane.b32.xlu0 %v172, 107
    %v174 = vpop.permute.xlu0 %173
    %vm175 = vcmask 7168
    %s176 = scalar_lea.vmem %s1, 21
    %177 = vst.msk [vmem:[%s176] sm:$0x1] %vm175, %v174
    %s178 = scalar_lea.vmem %s1, 84
    %179 = vst.msk [vmem:[%s178] sm:$0x2] %vm175, %v174
    %v180 = vld [vmem:[#allocation0] sm:$0x3]
    %181 = vrot.lane.b32.xlu0 %v180, 106
    %v182 = vpop.permute.xlu0 %181
    %vm183 = vcmask 7168
    %s184 = scalar_lea.vmem %s1, 22
    %185 = vst.msk [vmem:[%s184] sm:$0x1] %vm183, %v182
    %s186 = scalar_lea.vmem %s1, 85
    %187 = vst.msk [vmem:[%s186] sm:$0x2] %vm183, %v182
    %v188 = vld [vmem:[#allocation0] sm:$0x3]
    %189 = vrot.lane.b32.xlu0 %v188, 105
    %v190 = vpop.permute.xlu0 %189
    %vm191 = vcmask 7168
    %s192 = scalar_lea.vmem %s1, 23
    %193 = vst.msk [vmem:[%s192] sm:$0x1] %vm191, %v190
    %s194 = scalar_lea.vmem %s1, 86
    %195 = vst.msk [vmem:[%s194] sm:$0x2] %vm191, %v190
    %v196 = vld [vmem:[#allocation0] sm:$0x3]
    %197 = vrot.lane.b32.xlu0 %v196, 104
    %v198 = vpop.permute.xlu0 %197
    %vm199 = vcmask 7168
    %s200 = scalar_lea.vmem %s1, 24
    %201 = vst.msk [vmem:[%s200] sm:$0x1] %vm199, %v198
    %s202 = scalar_lea.vmem %s1, 87
    %203 = vst.msk [vmem:[%s202] sm:$0x2] %vm199, %v198
    %v204 = vld [vmem:[#allocation0] sm:$0x3]
    %205 = vrot.lane.b32.xlu0 %v204, 103
    %v206 = vpop.permute.xlu0 %205
    %vm207 = vcmask 7168
    %s208 = scalar_lea.vmem %s1, 25
    %209 = vst.msk [vmem:[%s208] sm:$0x1] %vm207, %v206
    %s210 = scalar_lea.vmem %s1, 88
    %211 = vst.msk [vmem:[%s210] sm:$0x2] %vm207, %v206
    %v212 = vld [vmem:[#allocation0] sm:$0x3]
    %213 = vrot.lane.b32.xlu0 %v212, 102
    %v214 = vpop.permute.xlu0 %213
    %vm215 = vcmask 7168
    %s216 = scalar_lea.vmem %s1, 26
    %217 = vst.msk [vmem:[%s216] sm:$0x1] %vm215, %v214
    %s218 = scalar_lea.vmem %s1, 89
    %219 = vst.msk [vmem:[%s218] sm:$0x2] %vm215, %v214
    %v220 = vld [vmem:[#allocation0] sm:$0x3]
    %221 = vrot.lane.b32.xlu0 %v220, 101
    %v222 = vpop.permute.xlu0 %221
    %vm223 = vcmask 7168
    %s224 = scalar_lea.vmem %s1, 27
    %225 = vst.msk [vmem:[%s224] sm:$0x1] %vm223, %v222
    %s226 = scalar_lea.vmem %s1, 90
    %227 = vst.msk [vmem:[%s226] sm:$0x2] %vm223, %v222
    %v228 = vld [vmem:[#allocation0] sm:$0x3]
    %229 = vrot.lane.b32.xlu0 %v228, 100
    %v230 = vpop.permute.xlu0 %229
    %vm231 = vcmask 7168
    %s232 = scalar_lea.vmem %s1, 28
    %233 = vst.msk [vmem:[%s232] sm:$0x1] %vm231, %v230
    %s234 = scalar_lea.vmem %s1, 91
    %235 = vst.msk [vmem:[%s234] sm:$0x2] %vm231, %v230
    %v236 = vld [vmem:[#allocation0] sm:$0x3]
    %237 = vrot.lane.b32.xlu0 %v236, 99
    %v238 = vpop.permute.xlu0 %237
    %vm239 = vcmask 7168
    %s240 = scalar_lea.vmem %s1, 29
    %241 = vst.msk [vmem:[%s240] sm:$0x1] %vm239, %v238
    %s242 = scalar_lea.vmem %s1, 92
    %243 = vst.msk [vmem:[%s242] sm:$0x2] %vm239, %v238
    %v244 = vld [vmem:[#allocation0] sm:$0x3]
    %245 = vrot.lane.b32.xlu0 %v244, 98
    %v246 = vpop.permute.xlu0 %245
    %vm247 = vcmask 7168
    %s248 = scalar_lea.vmem %s1, 30
    %249 = vst.msk [vmem:[%s248] sm:$0x1] %vm247, %v246
    %s250 = scalar_lea.vmem %s1, 93
    %251 = vst.msk [vmem:[%s250] sm:$0x2] %vm247, %v246
    %v252 = vld [vmem:[#allocation0] sm:$0x3]
    %253 = vrot.lane.b32.xlu0 %v252, 97
    %v254 = vpop.permute.xlu0 %253
    %vm255 = vcmask 7168
    %s256 = scalar_lea.vmem %s1, 31
    %257 = vst.msk [vmem:[%s256] sm:$0x1] %vm255, %v254
    %s258 = scalar_lea.vmem %s1, 94
    %259 = vst.msk [vmem:[%s258] sm:$0x2] %vm255, %v254
    %v260 = vld [vmem:[#allocation0] sm:$0x3]
    %261 = vrot.lane.b32.xlu0 %v260, 96
    %v262 = vpop.permute.xlu0 %261
    %vm263 = vcmask 7168
    %s264 = scalar_lea.vmem %s1, 32
    %265 = vst.msk [vmem:[%s264] sm:$0x1] %vm263, %v262
    %s266 = scalar_lea.vmem %s1, 95
    %267 = vst.msk [vmem:[%s266] sm:$0x2] %vm263, %v262
    %v268 = vld [vmem:[#allocation0] sm:$0x3]
    %269 = vrot.lane.b32.xlu0 %v268, 95
    %v270 = vpop.permute.xlu0 %269
    %vm271 = vcmask 7168
    %s272 = scalar_lea.vmem %s1, 33
    %273 = vst.msk [vmem:[%s272] sm:$0x1] %vm271, %v270
    %s274 = scalar_lea.vmem %s1, 96
    %275 = vst.msk [vmem:[%s274] sm:$0x2] %vm271, %v270
    %v276 = vld [vmem:[#allocation0] sm:$0x3]
    %277 = vrot.lane.b32.xlu0 %v276, 94
    %v278 = vpop.permute.xlu0 %277
    %vm279 = vcmask 7168
    %s280 = scalar_lea.vmem %s1, 34
    %281 = vst.msk [vmem:[%s280] sm:$0x1] %vm279, %v278
    %s282 = scalar_lea.vmem %s1, 97
    %283 = vst.msk [vmem:[%s282] sm:$0x2] %vm279, %v278
    %v284 = vld [vmem:[#allocation0] sm:$0x3]
    %285 = vrot.lane.b32.xlu0 %v284, 93
    %v286 = vpop.permute.xlu0 %285
    %vm287 = vcmask 7168
    %s288 = scalar_lea.vmem %s1, 35
    %289 = vst.msk [vmem:[%s288] sm:$0x1] %vm287, %v286
    %s290 = scalar_lea.vmem %s1, 98
    %291 = vst.msk [vmem:[%s290] sm:$0x2] %vm287, %v286
    %v292 = vld [vmem:[#allocation0] sm:$0x3]
    %293 = vrot.lane.b32.xlu0 %v292, 92
    %v294 = vpop.permute.xlu0 %293
    %vm295 = vcmask 7168
    %s296 = scalar_lea.vmem %s1, 36
    %297 = vst.msk [vmem:[%s296] sm:$0x1] %vm295, %v294
    %s298 = scalar_lea.vmem %s1, 99
    %299 = vst.msk [vmem:[%s298] sm:$0x2] %vm295, %v294
    %v300 = vld [vmem:[#allocation0] sm:$0x3]
    %301 = vrot.lane.b32.xlu0 %v300, 91
    %v302 = vpop.permute.xlu0 %301
    %vm303 = vcmask 7168
    %s304 = scalar_lea.vmem %s1, 37
    %305 = vst.msk [vmem:[%s304] sm:$0x1] %vm303, %v302
    %s306 = scalar_lea.vmem %s1, 100
    %307 = vst.msk [vmem:[%s306] sm:$0x2] %vm303, %v302
    %v308 = vld [vmem:[#allocation0] sm:$0x3]
    %309 = vrot.lane.b32.xlu0 %v308, 90
    %v310 = vpop.permute.xlu0 %309
    %vm311 = vcmask 7168
    %s312 = scalar_lea.vmem %s1, 38
    %313 = vst.msk [vmem:[%s312] sm:$0x1] %vm311, %v310
    %s314 = scalar_lea.vmem %s1, 101
    %315 = vst.msk [vmem:[%s314] sm:$0x2] %vm311, %v310
    %v316 = vld [vmem:[#allocation0] sm:$0x3]
    %317 = vrot.lane.b32.xlu0 %v316, 89
    %v318 = vpop.permute.xlu0 %317
    %vm319 = vcmask 7168
    %s320 = scalar_lea.vmem %s1, 39
    %321 = vst.msk [vmem:[%s320] sm:$0x1] %vm319, %v318
    %s322 = scalar_lea.vmem %s1, 102
    %323 = vst.msk [vmem:[%s322] sm:$0x2] %vm319, %v318
    %v324 = vld [vmem:[#allocation0] sm:$0x3]
    %325 = vrot.lane.b32.xlu0 %v324, 88
    %v326 = vpop.permute.xlu0 %325
    %vm327 = vcmask 7168
    %s328 = scalar_lea.vmem %s1, 40
    %329 = vst.msk [vmem:[%s328] sm:$0x1] %vm327, %v326
    %s330 = scalar_lea.vmem %s1, 103
    %331 = vst.msk [vmem:[%s330] sm:$0x2] %vm327, %v326
    %v332 = vld [vmem:[#allocation0] sm:$0x3]
    %333 = vrot.lane.b32.xlu0 %v332, 87
    %v334 = vpop.permute.xlu0 %333
    %vm335 = vcmask 7168
    %s336 = scalar_lea.vmem %s1, 41
    %337 = vst.msk [vmem:[%s336] sm:$0x1] %vm335, %v334
    %s338 = scalar_lea.vmem %s1, 104
    %339 = vst.msk [vmem:[%s338] sm:$0x2] %vm335, %v334
    %v340 = vld [vmem:[#allocation0] sm:$0x3]
    %341 = vrot.lane.b32.xlu0 %v340, 86
    %v342 = vpop.permute.xlu0 %341
    %vm343 = vcmask 7168
    %s344 = scalar_lea.vmem %s1, 42
    %345 = vst.msk [vmem:[%s344] sm:$0x1] %vm343, %v342
    %s346 = scalar_lea.vmem %s1, 105
    %347 = vst.msk [vmem:[%s346] sm:$0x2] %vm343, %v342
    %v348 = vld [vmem:[#allocation0] sm:$0x3]
    %349 = vrot.lane.b32.xlu0 %v348, 85
    %v350 = vpop.permute.xlu0 %349
    %vm351 = vcmask 7168
    %s352 = scalar_lea.vmem %s1, 43
    %353 = vst.msk [vmem:[%s352] sm:$0x1] %vm351, %v350
    %s354 = scalar_lea.vmem %s1, 106
    %355 = vst.msk [vmem:[%s354] sm:$0x2] %vm351, %v350
    %v356 = vld [vmem:[#allocation0] sm:$0x3]
    %357 = vrot.lane.b32.xlu0 %v356, 84
    %v358 = vpop.permute.xlu0 %357
    %vm359 = vcmask 7168
    %s360 = scalar_lea.vmem %s1, 44
    %361 = vst.msk [vmem:[%s360] sm:$0x1] %vm359, %v358
    %s362 = scalar_lea.vmem %s1, 107
    %363 = vst.msk [vmem:[%s362] sm:$0x2] %vm359, %v358
    %v364 = vld [vmem:[#allocation0] sm:$0x3]
    %365 = vrot.lane.b32.xlu0 %v364, 83
    %v366 = vpop.permute.xlu0 %365
    %vm367 = vcmask 7168
    %s368 = scalar_lea.vmem %s1, 45
    %369 = vst.msk [vmem:[%s368] sm:$0x1] %vm367, %v366
    %s370 = scalar_lea.vmem %s1, 108
    %371 = vst.msk [vmem:[%s370] sm:$0x2] %vm367, %v366
    %v372 = vld [vmem:[#allocation0] sm:$0x3]
    %373 = vrot.lane.b32.xlu0 %v372, 82
    %v374 = vpop.permute.xlu0 %373
    %vm375 = vcmask 7168
    %s376 = scalar_lea.vmem %s1, 46
    %377 = vst.msk [vmem:[%s376] sm:$0x1] %vm375, %v374
    %s378 = scalar_lea.vmem %s1, 109
    %379 = vst.msk [vmem:[%s378] sm:$0x2] %vm375, %v374
    %v380 = vld [vmem:[#allocation0] sm:$0x3]
    %381 = vrot.lane.b32.xlu0 %v380, 81
    %v382 = vpop.permute.xlu0 %381
    %vm383 = vcmask 7168
    %s384 = scalar_lea.vmem %s1, 47
    %385 = vst.msk [vmem:[%s384] sm:$0x1] %vm383, %v382
    %s386 = scalar_lea.vmem %s1, 110
    %387 = vst.msk [vmem:[%s386] sm:$0x2] %vm383, %v382
    %v388 = vld [vmem:[#allocation0] sm:$0x3]
    %389 = vrot.lane.b32.xlu0 %v388, 80
    %v390 = vpop.permute.xlu0 %389
    %vm391 = vcmask 7168
    %s392 = scalar_lea.vmem %s1, 48
    %393 = vst.msk [vmem:[%s392] sm:$0x1] %vm391, %v390
    %s394 = scalar_lea.vmem %s1, 111
    %395 = vst.msk [vmem:[%s394] sm:$0x2] %vm391, %v390
    %v396 = vld [vmem:[#allocation0] sm:$0x3]
    %397 = vrot.lane.b32.xlu0 %v396, 79
    %v398 = vpop.permute.xlu0 %397
    %vm399 = vcmask 7168
    %s400 = scalar_lea.vmem %s1, 49
    %401 = vst.msk [vmem:[%s400] sm:$0x1] %vm399, %v398
    %s402 = scalar_lea.vmem %s1, 112
    %403 = vst.msk [vmem:[%s402] sm:$0x2] %vm399, %v398
    %v404 = vld [vmem:[#allocation0] sm:$0x3]
    %405 = vrot.lane.b32.xlu0 %v404, 78
    %v406 = vpop.permute.xlu0 %405
    %vm407 = vcmask 7168
    %s408 = scalar_lea.vmem %s1, 50
    %409 = vst.msk [vmem:[%s408] sm:$0x1] %vm407, %v406
    %s410 = scalar_lea.vmem %s1, 113
    %411 = vst.msk [vmem:[%s410] sm:$0x2] %vm407, %v406
    %v412 = vld [vmem:[#allocation0] sm:$0x3]
    %413 = vrot.lane.b32.xlu0 %v412, 77
    %v414 = vpop.permute.xlu0 %413
    %vm415 = vcmask 7168
    %s416 = scalar_lea.vmem %s1, 51
    %417 = vst.msk [vmem:[%s416] sm:$0x1] %vm415, %v414
    %s418 = scalar_lea.vmem %s1, 114
    %419 = vst.msk [vmem:[%s418] sm:$0x2] %vm415, %v414
    %v420 = vld [vmem:[#allocation0] sm:$0x3]
    %421 = vrot.lane.b32.xlu0 %v420, 76
    %v422 = vpop.permute.xlu0 %421
    %vm423 = vcmask 7168
    %s424 = scalar_lea.vmem %s1, 52
    %425 = vst.msk [vmem:[%s424] sm:$0x1] %vm423, %v422
    %s426 = scalar_lea.vmem %s1, 115
    %427 = vst.msk [vmem:[%s426] sm:$0x2] %vm423, %v422
    %v428 = vld [vmem:[#allocation0] sm:$0x3]
    %429 = vrot.lane.b32.xlu0 %v428, 75
    %v430 = vpop.permute.xlu0 %429
    %vm431 = vcmask 7168
    %s432 = scalar_lea.vmem %s1, 53
    %433 = vst.msk [vmem:[%s432] sm:$0x1] %vm431, %v430
    %s434 = scalar_lea.vmem %s1, 116
    %435 = vst.msk [vmem:[%s434] sm:$0x2] %vm431, %v430
    %v436 = vld [vmem:[#allocation0] sm:$0x3]
    %437 = vrot.lane.b32.xlu0 %v436, 74
    %v438 = vpop.permute.xlu0 %437
    %vm439 = vcmask 7168
    %s440 = scalar_lea.vmem %s1, 54
    %441 = vst.msk [vmem:[%s440] sm:$0x1] %vm439, %v438
    %s442 = scalar_lea.vmem %s1, 117
    %443 = vst.msk [vmem:[%s442] sm:$0x2] %vm439, %v438
    %v444 = vld [vmem:[#allocation0] sm:$0x3]
    %445 = vrot.lane.b32.xlu0 %v444, 73
    %v446 = vpop.permute.xlu0 %445
    %vm447 = vcmask 7168
    %s448 = scalar_lea.vmem %s1, 55
    %449 = vst.msk [vmem:[%s448] sm:$0x1] %vm447, %v446
    %s450 = scalar_lea.vmem %s1, 118
    %451 = vst.msk [vmem:[%s450] sm:$0x2] %vm447, %v446
    %v452 = vld [vmem:[#allocation0] sm:$0x3]
    %453 = vrot.lane.b32.xlu0 %v452, 72
    %v454 = vpop.permute.xlu0 %453
    %vm455 = vcmask 7168
    %s456 = scalar_lea.vmem %s1, 56
    %457 = vst.msk [vmem:[%s456] sm:$0x1] %vm455, %v454
    %s458 = scalar_lea.vmem %s1, 119
    %459 = vst.msk [vmem:[%s458] sm:$0x2] %vm455, %v454
    %v460 = vld [vmem:[#allocation0] sm:$0x3]
    %461 = vrot.lane.b32.xlu0 %v460, 71
    %v462 = vpop.permute.xlu0 %461
    %vm463 = vcmask 7168
    %s464 = scalar_lea.vmem %s1, 57
    %465 = vst.msk [vmem:[%s464] sm:$0x1] %vm463, %v462
    %s466 = scalar_lea.vmem %s1, 120
    %467 = vst.msk [vmem:[%s466] sm:$0x2] %vm463, %v462
    %v468 = vld [vmem:[#allocation0] sm:$0x3]
    %469 = vrot.lane.b32.xlu0 %v468, 70
    %v470 = vpop.permute.xlu0 %469
    %vm471 = vcmask 7168
    %s472 = scalar_lea.vmem %s1, 58
    %473 = vst.msk [vmem:[%s472] sm:$0x1] %vm471, %v470
    %s474 = scalar_lea.vmem %s1, 121
    %475 = vst.msk [vmem:[%s474] sm:$0x2] %vm471, %v470
    %v476 = vld [vmem:[#allocation0] sm:$0x3]
    %477 = vrot.lane.b32.xlu0 %v476, 69
    %v478 = vpop.permute.xlu0 %477
    %vm479 = vcmask 7168
    %s480 = scalar_lea.vmem %s1, 59
    %481 = vst.msk [vmem:[%s480] sm:$0x1] %vm479, %v478
    %s482 = scalar_lea.vmem %s1, 122
    %483 = vst.msk [vmem:[%s482] sm:$0x2] %vm479, %v478
    %v484 = vld [vmem:[#allocation0] sm:$0x3]
    %485 = vrot.lane.b32.xlu0 %v484, 68
    %v486 = vpop.permute.xlu0 %485
    %vm487 = vcmask 7168
    %s488 = scalar_lea.vmem %s1, 60
    %489 = vst.msk [vmem:[%s488] sm:$0x1] %vm487, %v486
    %s490 = scalar_lea.vmem %s1, 123
    %491 = vst.msk [vmem:[%s490] sm:$0x2] %vm487, %v486
    %v492 = vld [vmem:[#allocation0] sm:$0x3]
    %493 = vrot.lane.b32.xlu0 %v492, 67
    %v494 = vpop.permute.xlu0 %493
    %vm495 = vcmask 7168
    %s496 = scalar_lea.vmem %s1, 61
    %497 = vst.msk [vmem:[%s496] sm:$0x1] %vm495, %v494
    %s498 = scalar_lea.vmem %s1, 124
    %499 = vst.msk [vmem:[%s498] sm:$0x2] %vm495, %v494
    %v500 = vld [vmem:[#allocation0] sm:$0x3]
    %501 = vrot.lane.b32.xlu0 %v500, 66
    %v502 = vpop.permute.xlu0 %501
    %vm503 = vcmask 7168
    %s504 = scalar_lea.vmem %s1, 62
    %505 = vst.msk [vmem:[%s504] sm:$0x1] %vm503, %v502
    %s506 = scalar_lea.vmem %s1, 125
    %507 = vst.msk [vmem:[%s506] sm:$0x2] %vm503, %v502
    %v508 = vld [vmem:[#allocation0] sm:$0x3]
    %509 = vrot.lane.b32.xlu0 %v508, 65
    %v510 = vpop.permute.xlu0 %509
    %vm511 = vcmask 7168
    %s512 = scalar_lea.vmem %s1, 63
    %513 = vst.msk [vmem:[%s512] sm:$0x1] %vm511, %v510
    %s514 = scalar_lea.vmem %s1, 126
    %515 = vst.msk [vmem:[%s514] sm:$0x2] %vm511, %v510

// kernel: inception_a.1
$region0: #{inception_a.1}
  #allocation0 [shape = 'u32[]', space=smem, size = 0x4, offset = 0x4, fixed_abs, tag = 'smem constant byte address 0x4 - core index']
  #allocation1 [shape = 'u32[144,128]{1,0:T(1,128)}', space=vmem, size = 0x12000, scoped, tag = 'internal scratch']
  %s0 = inlined_call_operand.vmem [shape: f32[128,1], index: 0, kind: input, shape index: {}]
  %s1 = inlined_call_operand.vmem [shape: f32[26,128], index: 1, kind: input, shape index: {}]
  %s2 = inlined_call_operand.vmem [shape: bf16[384,128], index: 2, kind: input, shape index: {}]
  %s3 = inlined_call_operand.hbm [shape: f32[128,288], index: 3, kind: output, shape index: {}]
  %s4 = sld [smem:[#allocation0]]
  $region22: #{inception_a.1} parent=0
    _
  %s6 = ssub.s32 1, %s4
  %s7 = scalar_select 0, %s6, %s4
  $region1: #{inception_a.1} parent=0
    #allocation2 [shape = 'u8[196608]{0}', space=vmem, size = 0x30000, scoped, tag = 'output window, operand 0, single buffered']
    #allocation3 [shape = 's32[1]{0}', space=sflag, size = 0x4, scoped, tag = 'scoped memory for inception_a.1']
    %8 = vsyncpa [#allocation3], 0
    // Predicated region
    $region2: #{inception_a.1} parent=1 // pred_check
      _
    $region3: #{inception_a.1} parent=1 // pred_check_branch
      %10 = sbr.rel (0) target = $region5
    $region4: #{inception_a.1} parent=1 // pred_region
      _
    $region5: #{inception_a.1} parent=1 // pred_fallthru
      _
    // Predicated region
    $region6: #{inception_a.1} parent=1 // pred_check
      _
    $region7: #{inception_a.1} parent=1 // pred_check_branch
      %12 = sbr.rel (0) target = $region9
    $region8: #{inception_a.1} parent=1 // pred_region
      _
    $region9: #{inception_a.1} parent=1 // pred_fallthru
      _
    // Predicated region
    $region10: #{inception_a.1} parent=1 // pred_check
      _
    $region11: #{inception_a.1} parent=1 // pred_check_branch
      %14 = sbr.rel (0) target = $region13
    $region12: #{inception_a.1} parent=1 // pred_region
      _
    $region13: #{inception_a.1} parent=1 // pred_fallthru
      _
    %v16 = vld [vmem:[%s1] sm:$0xff]
    %v17 = vld [vmem:[%s1 + $0x8] sm:$0xff]
    %v18 = vld [vmem:[%s1 + $0x10] sm:$0xff]
    %v19 = vld [vmem:[%s1 + $0x18] sm:$0x3]
    %v20 = vld [vmem:[%s0] sm:$0xff]
    %v21 = vld [vmem:[%s0 + $0x8] sm:$0xff]
    %v22 = vld [vmem:[%s0 + $0x10] sm:$0xff]
    %v23 = vld [vmem:[%s0 + $0x18] sm:$0xff]
    %v24 = vld [vmem:[%s0 + $0x20] sm:$0xff]
    %v25 = vld [vmem:[%s0 + $0x28] sm:$0xff]
    %v26 = vld [vmem:[%s0 + $0x30] sm:$0xff]
    %v27 = vld [vmem:[%s0 + $0x38] sm:$0xff]
    %v28 = vld [vmem:[%s0 + $0x40] sm:$0xff]
    %v29 = vld [vmem:[%s0 + $0x48] sm:$0xff]
    %v30 = vld [vmem:[%s0 + $0x50] sm:$0xff]
    %v31 = vld [vmem:[%s0 + $0x58] sm:$0xff]
    %v32 = vld [vmem:[%s0 + $0x60] sm:$0xff]
    %v33 = vld [vmem:[%s0 + $0x68] sm:$0xff]
    %v34 = vld [vmem:[%s0 + $0x70] sm:$0xff]
    %v35 = vld [vmem:[%s0 + $0x78] sm:$0xff]
    %37 = vset.pattern.permute.xlu0 0
    %38 = vperm.xlu0 %37, %v20
    %v39 = vpop.permute.xlu0 %38
    %42 = vset.pattern.permute.xlu0 0
    %43 = vperm.xlu0 %42, %v21
    %v44 = vpop.permute.xlu0 %43
    %47 = vset.pattern.permute.xlu0 0
    %48 = vperm.xlu0 %47, %v22
    %v49 = vpop.permute.xlu0 %48
    %52 = vset.pattern.permute.xlu0 0
    %53 = vperm.xlu0 %52, %v23
    %v54 = vpop.permute.xlu0 %53
    %57 = vset.pattern.permute.xlu0 0
    %58 = vperm.xlu0 %57, %v24
    %v59 = vpop.permute.xlu0 %58
    %62 = vset.pattern.permute.xlu0 0
    %63 = vperm.xlu0 %62, %v25
    %v64 = vpop.permute.xlu0 %63
    %67 = vset.pattern.permute.xlu0 0
    %68 = vperm.xlu0 %67, %v26
    %v69 = vpop.permute.xlu0 %68
    %72 = vset.pattern.permute.xlu0 0
    %73 = vperm.xlu0 %72, %v27
    %v74 = vpop.permute.xlu0 %73
    %77 = vset.pattern.permute.xlu0 0
    %78 = vperm.xlu0 %77, %v28
    %v79 = vpop.permute.xlu0 %78
    %82 = vset.pattern.permute.xlu0 0
    %83 = vperm.xlu0 %82, %v29
    %v84 = vpop.permute.xlu0 %83
    %87 = vset.pattern.permute.xlu0 0
    %88 = vperm.xlu0 %87, %v30
    %v89 = vpop.permute.xlu0 %88
    %92 = vset.pattern.permute.xlu0 0
    %93 = vperm.xlu0 %92, %v31
    %v94 = vpop.permute.xlu0 %93
    %97 = vset.pattern.permute.xlu0 0
    %98 = vperm.xlu0 %97, %v32
    %v99 = vpop.permute.xlu0 %98
    %102 = vset.pattern.permute.xlu0 0
    %103 = vperm.xlu0 %102, %v33
    %v104 = vpop.permute.xlu0 %103
    %107 = vset.pattern.permute.xlu0 0
    %108 = vperm.xlu0 %107, %v34
    %v109 = vpop.permute.xlu0 %108
    %112 = vset.pattern.permute.xlu0 0
    %113 = vperm.xlu0 %112, %v35
    %v114 = vpop.permute.xlu0 %113
    %v116 = vlaneseq
    %v117 = vshrl.u32 %v116, 7
    %v118 = vadd.s32 %v117, 8
    %v119 = vadd.s32 %v117, 16
    %v120 = vadd.s32 %v117, 24
    %v121 = vadd.s32 %v117, 32
    %v122 = vadd.s32 %v117, 40
    %v123 = vadd.s32 %v117, 48
    %v124 = vadd.s32 %v117, 56
    %v125 = vadd.s32 %v117, 64
    %v126 = vadd.s32 %v117, 72
    %v127 = vadd.s32 %v117, 80
    %v128 = vadd.s32 %v117, 88
    %v129 = vadd.s32 %v117, 96
    %v130 = vadd.s32 %v117, 104
    %v131 = vadd.s32 %v117, 112
    %v132 = vadd.s32 %v117, 120
    %v133 = vand.u32 %v117, 63
    %v134 = vand.u32 %v118, 63
    %v135 = vand.u32 %v119, 63
    %v136 = vand.u32 %v120, 63
    %v137 = vand.u32 %v121, 63
    %v138 = vand.u32 %v122, 63
    %v139 = vand.u32 %v123, 63
    %v140 = vand.u32 %v124, 63
    %v141 = vand.u32 %v125, 63
    %v142 = vand.u32 %v126, 63
    %v143 = vand.u32 %v127, 63
    %v144 = vand.u32 %v128, 63
    %v145 = vand.u32 %v129, 63
    %v146 = vand.u32 %v130, 63
    %v147 = vand.u32 %v131, 63
    %v148 = vand.u32 %v132, 63
    %v149 = vrot.slane %v39, 6
    %v150 = vrot.slane %v44, 6
    %v151 = vrot.slane %v49, 6
    %v152 = vrot.slane %v54, 6
    %v153 = vrot.slane %v59, 6
    %v154 = vrot.slane %v64, 6
    %v155 = vrot.slane %v69, 6
    %v156 = vrot.slane %v74, 6
    %v157 = vrot.slane %v79, 6
    %v158 = vrot.slane %v84, 6
    %v159 = vrot.slane %v89, 6
    %v160 = vrot.slane %v94, 6
    %v161 = vrot.slane %v99, 6
    %v162 = vrot.slane %v104, 6
    %v163 = vrot.slane %v109, 6
    %v164 = vrot.slane %v114, 6
    %vm165 = vcmp.lt.s32.totalorder %v117, 2
    %v166 = vsel %vm165, %v163, %v164
    %v167 = vsel %vm165, %v162, %v163
    %v168 = vsel %vm165, %v161, %v162
    %v169 = vsel %vm165, %v160, %v161
    %v170 = vsel %vm165, %v159, %v160
    %v171 = vsel %vm165, %v158, %v159
    %v172 = vsel %vm165, %v157, %v158
    %v173 = vsel %vm165, %v156, %v157
    %v174 = vsel %vm165, %v155, %v156
    %v175 = vsel %vm165, %v154, %v155
    %v176 = vsel %vm165, %v153, %v154
    %v177 = vsel %vm165, %v152, %v153
    %v178 = vsel %vm165, %v151, %v152
    %v179 = vsel %vm165, %v150, %v151
    %v180 = vsel %vm165, %v149, %v150
    %v181 = vsel %vm165, %v164, %v149
    %vm182 = vcmp.ge.s32.totalorder %v133, 2
    %vm183 = vcmp.ge.s32.totalorder %v134, 2
    %vm184 = vcmp.ge.s32.totalorder %v135, 2
    %vm185 = vcmp.ge.s32.totalorder %v136, 2
    %vm186 = vcmp.ge.s32.totalorder %v137, 2
    %vm187 = vcmp.ge.s32.totalorder %v138, 2
    %vm188 = vcmp.ge.s32.totalorder %v139, 2
    %vm189 = vcmp.ge.s32.totalorder %v140, 2
    %vm190 = vcmp.ge.s32.totalorder %v141, 2
    %vm191 = vcmp.ge.s32.totalorder %v142, 2
    %vm192 = vcmp.ge.s32.totalorder %v143, 2
    %vm193 = vcmp.ge.s32.totalorder %v144, 2
    %vm194 = vcmp.ge.s32.totalorder %v145, 2
    %vm195 = vcmp.ge.s32.totalorder %v146, 2
    %vm196 = vcmp.ge.s32.totalorder %v147, 2
    %vm197 = vcmp.ge.s32.totalorder %v148, 2
    %v198 = vrot.slane %v39, 7
    %v199 = vrot.slane %v44, 7
    %v200 = vrot.slane %v49, 7
    %v201 = vrot.slane %v54, 7
    %v202 = vrot.slane %v59, 7
    %v203 = vrot.slane %v64, 7
    %v204 = vrot.slane %v69, 7
    %v205 = vrot.slane %v74, 7
    %v206 = vrot.slane %v79, 7
    %v207 = vrot.slane %v84, 7
    %v208 = vrot.slane %v89, 7
    %v209 = vrot.slane %v94, 7
    %v210 = vrot.slane %v99, 7
    %v211 = vrot.slane %v104, 7
    %v212 = vrot.slane %v109, 7
    %v213 = vrot.slane %v114, 7
    %vm214 = vcmp.lt.s32.totalorder %v117, 1
    %v215 = vsel %vm214, %v212, %v213
    %v216 = vsel %vm214, %v211, %v212
    %v217 = vsel %vm214, %v210, %v211
    %v218 = vsel %vm214, %v209, %v210
    %v219 = vsel %vm214, %v208, %v209
    %v220 = vsel %vm214, %v207, %v208
    %v221 = vsel %vm214, %v206, %v207
    %v222 = vsel %vm214, %v205, %v206
    %v223 = vsel %vm214, %v204, %v205
    %v224 = vsel %vm214, %v203, %v204
    %v225 = vsel %vm214, %v202, %v203
    %v226 = vsel %vm214, %v201, %v202
    %v227 = vsel %vm214, %v200, %v201
    %v228 = vsel %vm214, %v199, %v200
    %v229 = vsel %vm214, %v198, %v199
    %v230 = vsel %vm214, %v213, %v198
    %vm231 = vcmp.ge.s32.totalorder %v133, 1
    %vm232 = vcmp.ge.s32.totalorder %v134, 1
    %vm233 = vcmp.ge.s32.totalorder %v135, 1
    %vm234 = vcmp.ge.s32.totalorder %v136, 1
    %vm235 = vcmp.ge.s32.totalorder %v137, 1
    %vm236 = vcmp.ge.s32.totalorder %v138, 1
    %vm237 = vcmp.ge.s32.totalorder %v139, 1
    %vm238 = vcmp.ge.s32.totalorder %v140, 1
    %vm239 = vcmp.ge.s32.totalorder %v141, 1
    %vm240 = vcmp.ge.s32.totalorder %v142, 1
    %vm241 = vcmp.ge.s32.totalorder %v143, 1
    %vm242 = vcmp.ge.s32.totalorder %v144, 1
    %vm243 = vcmp.ge.s32.totalorder %v145, 1
    %vm244 = vcmp.ge.s32.totalorder %v146, 1
    %vm245 = vcmp.ge.s32.totalorder %v147, 1
    %vm246 = vcmp.ge.s32.totalorder %v148, 1
    %v247 = vrot.slane %v39, 1
    %v248 = vrot.slane %v44, 1
    %v249 = vrot.slane %v49, 1
    %v250 = vrot.slane %v54, 1
    %v251 = vrot.slane %v59, 1
    %v252 = vrot.slane %v64, 1
    %v253 = vrot.slane %v69, 1
    %v254 = vrot.slane %v74, 1
    %v255 = vrot.slane %v79, 1
    %v256 = vrot.slane %v84, 1
    %v257 = vrot.slane %v89, 1
    %v258 = vrot.slane %v94, 1
    %v259 = vrot.slane %v99, 1
    %v260 = vrot.slane %v104, 1
    %v261 = vrot.slane %v109, 1
    %v262 = vrot.slane %v114, 1
    %vm263 = vcmp.lt.s32.totalorder %v117, 7
    %v264 = vsel %vm263, %v261, %v262
    %v265 = vsel %vm263, %v260, %v261
    %v266 = vsel %vm263, %v259, %v260
    %v267 = vsel %vm263, %v258, %v259
    %v268 = vsel %vm263, %v257, %v258
    %v269 = vsel %vm263, %v256, %v257
    %v270 = vsel %vm263, %v255, %v256
    %v271 = vsel %vm263, %v254, %v255
    %v272 = vsel %vm263, %v253, %v254
    %v273 = vsel %vm263, %v252, %v253
    %v274 = vsel %vm263, %v251, %v252
    %v275 = vsel %vm263, %v250, %v251
    %v276 = vsel %vm263, %v249, %v250
    %v277 = vsel %vm263, %v248, %v249
    %v278 = vsel %vm263, %v247, %v248
    %v279 = vsel %vm263, %v262, %v247
    %vm280 = vcmp.lt.s32.totalorder %v133, 63
    %vm281 = vcmp.lt.s32.totalorder %v134, 63
    %vm282 = vcmp.lt.s32.totalorder %v135, 63
    %vm283 = vcmp.lt.s32.totalorder %v136, 63
    %vm284 = vcmp.lt.s32.totalorder %v137, 63
    %vm285 = vcmp.lt.s32.totalorder %v138, 63
    %vm286 = vcmp.lt.s32.totalorder %v139, 63
    %vm287 = vcmp.lt.s32.totalorder %v140, 63
    %vm288 = vcmp.lt.s32.totalorder %v141, 63
    %vm289 = vcmp.lt.s32.totalorder %v142, 63
    %vm290 = vcmp.lt.s32.totalorder %v143, 63
    %vm291 = vcmp.lt.s32.totalorder %v144, 63
    %vm292 = vcmp.lt.s32.totalorder %v145, 63
    %vm293 = vcmp.lt.s32.totalorder %v146, 63
    %vm294 = vcmp.lt.s32.totalorder %v147, 63
    %vm295 = vcmp.lt.s32.totalorder %v148, 63
    %v296 = vrot.slane %v39, 2
    %v297 = vrot.slane %v44, 2
    %v298 = vrot.slane %v49, 2
    %v299 = vrot.slane %v54, 2
    %v300 = vrot.slane %v59, 2
    %v301 = vrot.slane %v64, 2
    %v302 = vrot.slane %v69, 2
    %v303 = vrot.slane %v74, 2
    %v304 = vrot.slane %v79, 2
    %v305 = vrot.slane %v84, 2
    %v306 = vrot.slane %v89, 2
    %v307 = vrot.slane %v94, 2
    %v308 = vrot.slane %v99, 2
    %v309 = vrot.slane %v104, 2
    %v310 = vrot.slane %v109, 2
    %v311 = vrot.slane %v114, 2
    %vm312 = vcmp.lt.s32.totalorder %v117, 6
    %v313 = vsel %vm312, %v310, %v311
    %v314 = vsel %vm312, %v309, %v310
    %v315 = vsel %vm312, %v308, %v309
    %v316 = vsel %vm312, %v307, %v308
    %v317 = vsel %vm312, %v306, %v307
    %v318 = vsel %vm312, %v305, %v306
    %v319 = vsel %vm312, %v304, %v305
    %v320 = vsel %vm312, %v303, %v304
    %v321 = vsel %vm312, %v302, %v303
    %v322 = vsel %vm312, %v301, %v302
    %v323 = vsel %vm312, %v300, %v301
    %v324 = vsel %vm312, %v299, %v300
    %v325 = vsel %vm312, %v298, %v299
    %v326 = vsel %vm312, %v297, %v298
    %v327 = vsel %vm312, %v296, %v297
    %v328 = vsel %vm312, %v311, %v296
    %vm329 = vcmp.lt.s32.totalorder %v133, 62
    %vm330 = vcmp.lt.s32.totalorder %v134, 62
    %vm331 = vcmp.lt.s32.totalorder %v135, 62
    %vm332 = vcmp.lt.s32.totalorder %v136, 62
    %vm333 = vcmp.lt.s32.totalorder %v137, 62
    %vm334 = vcmp.lt.s32.totalorder %v138, 62
    %vm335 = vcmp.lt.s32.totalorder %v139, 62
    %vm336 = vcmp.lt.s32.totalorder %v140, 62
    %vm337 = vcmp.lt.s32.totalorder %v141, 62
    %vm338 = vcmp.lt.s32.totalorder %v142, 62
    %vm339 = vcmp.lt.s32.totalorder %v143, 62
    %vm340 = vcmp.lt.s32.totalorder %v144, 62
    %vm341 = vcmp.lt.s32.totalorder %v145, 62
    %vm342 = vcmp.lt.s32.totalorder %v146, 62
    %vm343 = vcmp.lt.s32.totalorder %v147, 62
    %vm344 = vcmp.lt.s32.totalorder %v148, 62
    %v345 = vlaneseq
    %v346 = vshrl.u32 %v345, 7
    %v347 = vsub.s32 0, %v346
    %v348 = vrot.slane %v16, %v347
    %v349 = vmul.f32 %v39, %v348
    %v350 = vmul.f32 %v44, %v348
    %v351 = vmul.f32 %v49, %v348
    %v352 = vmul.f32 %v54, %v348
    %v353 = vmul.f32 %v59, %v348
    %v354 = vmul.f32 %v64, %v348
    %v355 = vmul.f32 %v69, %v348
    %v356 = vmul.f32 %v74, %v348
    %v357 = vmul.f32 %v79, %v348
    %v358 = vmul.f32 %v84, %v348
    %v359 = vmul.f32 %v89, %v348
    %v360 = vmul.f32 %v94, %v348
    %v361 = vmul.f32 %v99, %v348
    %v362 = vmul.f32 %v104, %v348
    %v363 = vmul.f32 %v109, %v348
    %v364 = vmul.f32 %v114, %v348
    %v365 = vlaneseq
    %v366 = vshrl.u32 %v365, 7
    %v367 = vsub.s32 1, %v366
    %v368 = vrot.slane %v16, %v367
    %v369 = vadd.f32 %v349, %v368
    %v370 = vadd.f32 %v350, %v368
    %v371 = vadd.f32 %v351, %v368
    %v372 = vadd.f32 %v352, %v368
    %v373 = vadd.f32 %v353, %v368
    %v374 = vadd.f32 %v354, %v368
    %v375 = vadd.f32 %v355, %v368
    %v376 = vadd.f32 %v356, %v368
    %v377 = vadd.f32 %v357, %v368
    %v378 = vadd.f32 %v358, %v368
    %v379 = vadd.f32 %v359, %v368
    %v380 = vadd.f32 %v360, %v368
    %v381 = vadd.f32 %v361, %v368
    %v382 = vadd.f32 %v362, %v368
    %v383 = vadd.f32 %v363, %v368
    %v384 = vadd.f32 %v364, %v368
    %v385 = vlaneseq
    %v386 = vshrl.u32 %v385, 7
    %v387 = vsub.s32 6, %v386
    %v388 = vrot.slane %v16, %v387
    %v389 = vmul.f32 %v39, %v388
    %v390 = vmul.f32 %v44, %v388
    %v391 = vmul.f32 %v49, %v388
    %v392 = vmul.f32 %v54, %v388
    %v393 = vmul.f32 %v59, %v388
    %v394 = vmul.f32 %v64, %v388
    %v395 = vmul.f32 %v69, %v388
    %v396 = vmul.f32 %v74, %v388
    %v397 = vmul.f32 %v79, %v388
    %v398 = vmul.f32 %v84, %v388
    %v399 = vmul.f32 %v89, %v388
    %v400 = vmul.f32 %v94, %v388
    %v401 = vmul.f32 %v99, %v388
    %v402 = vmul.f32 %v104, %v388
    %v403 = vmul.f32 %v109, %v388
    %v404 = vmul.f32 %v114, %v388
    %v405 = vlaneseq
    %v406 = vshrl.u32 %v405, 7
    %v407 = vsub.s32 3, %v406
    %v408 = vrot.slane %v17, %v407
    %v409 = vadd.f32 %v389, %v408
    %v410 = vadd.f32 %v390, %v408
    %v411 = vadd.f32 %v391, %v408
    %v412 = vadd.f32 %v392, %v408
    %v413 = vadd.f32 %v393, %v408
    %v414 = vadd.f32 %v394, %v408
    %v415 = vadd.f32 %v395, %v408
    %v416 = vadd.f32 %v396, %v408
    %v417 = vadd.f32 %v397, %v408
    %v418 = vadd.f32 %v398, %v408
    %v419 = vadd.f32 %v399, %v408
    %v420 = vadd.f32 %v400, %v408
    %v421 = vadd.f32 %v401, %v408
    %v422 = vadd.f32 %v402, %v408
    %v423 = vadd.f32 %v403, %v408
    %v424 = vadd.f32 %v404, %v408
    %v425 = vlaneseq
    %v426 = vshrl.u32 %v425, 7
    %v427 = vsub.s32 4, %v426
    %v428 = vrot.slane %v16, %v427
    %v429 = vmul.f32 %v181, %v428
    %v430 = vmul.f32 %v180, %v428
    %v431 = vmul.f32 %v179, %v428
    %v432 = vmul.f32 %v178, %v428
    %v433 = vmul.f32 %v177, %v428
    %v434 = vmul.f32 %v176, %v428
    %v435 = vmul.f32 %v175, %v428
    %v436 = vmul.f32 %v174, %v428
    %v437 = vmul.f32 %v173, %v428
    %v438 = vmul.f32 %v172, %v428
    %v439 = vmul.f32 %v171, %v428
    %v440 = vmul.f32 %v170, %v428
    %v441 = vmul.f32 %v169, %v428
    %v442 = vmul.f32 %v168, %v428
    %v443 = vmul.f32 %v167, %v428
    %v444 = vmul.f32 %v166, %v428
    %v445 = vlaneseq
    %v446 = vshrl.u32 %v445, 7
    %v447 = vsub.s32 1, %v446
    %v448 = vrot.slane %v17, %v447
    %v449 = vadd.f32 %v429, %v448
    %v450 = vadd.f32 %v430, %v448
    %v451 = vadd.f32 %v431, %v448
    %v452 = vadd.f32 %v432, %v448
    %v453 = vadd.f32 %v433, %v448
    %v454 = vadd.f32 %v434, %v448
    %v455 = vadd.f32 %v435, %v448
    %v456 = vadd.f32 %v436, %v448
    %v457 = vadd.f32 %v437, %v448
    %v458 = vadd.f32 %v438, %v448
    %v459 = vadd.f32 %v439, %v448
    %v460 = vadd.f32 %v440, %v448
    %v461 = vadd.f32 %v441, %v448
    %v462 = vadd.f32 %v442, %v448
    %v463 = vadd.f32 %v443, %v448
    %v464 = vadd.f32 %v444, %v448
    %v465 = vsel %vm182, 1, 0
    %v466 = vsel %vm183, 1, 0
    %v467 = vsel %vm184, 1, 0
    %v468 = vsel %vm185, 1, 0
    %v469 = vsel %vm186, 1, 0
    %v470 = vsel %vm187, 1, 0
    %v471 = vsel %vm188, 1, 0
    %v472 = vsel %vm189, 1, 0
    %v473 = vsel %vm190, 1, 0
    %v474 = vsel %vm191, 1, 0
    %v475 = vsel %vm192, 1, 0
    %v476 = vsel %vm193, 1, 0
    %v477 = vsel %vm194, 1, 0
    %v478 = vsel %vm195, 1, 0
    %v479 = vsel %vm196, 1, 0
    %v480 = vsel %vm197, 1, 0
    %vm481 = vcmp.eq.s32.totalorder %v465, 1
    %vm482 = vcmp.eq.s32.totalorder %v466, 1
    %vm483 = vcmp.eq.s32.totalorder %v467, 1
    %vm484 = vcmp.eq.s32.totalorder %v468, 1
    %vm485 = vcmp.eq.s32.totalorder %v469, 1
    %vm486 = vcmp.eq.s32.totalorder %v470, 1
    %vm487 = vcmp.eq.s32.totalorder %v471, 1
    %vm488 = vcmp.eq.s32.totalorder %v472, 1
    %vm489 = vcmp.eq.s32.totalorder %v473, 1
    %vm490 = vcmp.eq.s32.totalorder %v474, 1
    %vm491 = vcmp.eq.s32.totalorder %v475, 1
    %vm492 = vcmp.eq.s32.totalorder %v476, 1
    %vm493 = vcmp.eq.s32.totalorder %v477, 1
    %vm494 = vcmp.eq.s32.totalorder %v478, 1
    %vm495 = vcmp.eq.s32.totalorder %v479, 1
    %vm496 = vcmp.eq.s32.totalorder %v480, 1
    %v497 = vsel %vm481, %v449, 0.0
    %v498 = vsel %vm482, %v450, 0.0
    %v499 = vsel %vm483, %v451, 0.0
    %v500 = vsel %vm484, %v452, 0.0
    %v501 = vsel %vm485, %v453, 0.0
    %v502 = vsel %vm486, %v454, 0.0
    %v503 = vsel %vm487, %v455, 0.0
    %v504 = vsel %vm488, %v456, 0.0
    %v505 = vsel %vm489, %v457, 0.0
    %v506 = vsel %vm490, %v458, 0.0
    %v507 = vsel %vm491, %v459, 0.0
    %v508 = vsel %vm492, %v460, 0.0
    %v509 = vsel %vm493, %v461, 0.0
    %v510 = vsel %vm494, %v462, 0.0
    %v511 = vsel %vm495, %v463, 0.0
    %v512 = vsel %vm496, %v464, 0.0
    %v513 = vadd.f32 %v409, %v497
    %v514 = vadd.f32 %v410, %v498
    %v515 = vadd.f32 %v411, %v499
    %v516 = vadd.f32 %v412, %v500
    %v517 = vadd.f32 %v413, %v501
    %v518 = vadd.f32 %v414, %v502
    %v519 = vadd.f32 %v415, %v503
    %v520 = vadd.f32 %v416, %v504
    %v521 = vadd.f32 %v417, %v505
    %v522 = vadd.f32 %v418, %v506
    %v523 = vadd.f32 %v419, %v507
    %v524 = vadd.f32 %v420, %v508
    %v525 = vadd.f32 %v421, %v509
    %v526 = vadd.f32 %v422, %v510
    %v527 = vadd.f32 %v423, %v511
    %v528 = vadd.f32 %v424, %v512
    %v529 = vlaneseq
    %v530 = vshrl.u32 %v529, 7
    %v531 = vsub.s32 5, %v530
    %v532 = vrot.slane %v16, %v531
    %v533 = vmul.f32 %v230, %v532
    %v534 = vmul.f32 %v229, %v532
    %v535 = vmul.f32 %v228, %v532
    %v536 = vmul.f32 %v227, %v532
    %v537 = vmul.f32 %v226, %v532
    %v538 = vmul.f32 %v225, %v532
    %v539 = vmul.f32 %v224, %v532
    %v540 = vmul.f32 %v223, %v532
    %v541 = vmul.f32 %v222, %v532
    %v542 = vmul.f32 %v221, %v532
    %v543 = vmul.f32 %v220, %v532
    %v544 = vmul.f32 %v219, %v532
    %v545 = vmul.f32 %v218, %v532
    %v546 = vmul.f32 %v217, %v532
    %v547 = vmul.f32 %v216, %v532
    %v548 = vmul.f32 %v215, %v532
    %v549 = vlaneseq
    %v550 = vshrl.u32 %v549, 7
    %v551 = vsub.s32 2, %v550
    %v552 = vrot.slane %v17, %v551
    %v553 = vadd.f32 %v533, %v552
    %v554 = vadd.f32 %v534, %v552
    %v555 = vadd.f32 %v535, %v552
    %v556 = vadd.f32 %v536, %v552
    %v557 = vadd.f32 %v537, %v552
    %v558 = vadd.f32 %v538, %v552
    %v559 = vadd.f32 %v539, %v552
    %v560 = vadd.f32 %v540, %v552
    %v561 = vadd.f32 %v541, %v552
    %v562 = vadd.f32 %v542, %v552
    %v563 = vadd.f32 %v543, %v552
    %v564 = vadd.f32 %v544, %v552
    %v565 = vadd.f32 %v545, %v552
    %v566 = vadd.f32 %v546, %v552
    %v567 = vadd.f32 %v547, %v552
    %v568 = vadd.f32 %v548, %v552
    %v569 = vsel %vm231, 1, 0
    %v570 = vsel %vm232, 1, 0
    %v571 = vsel %vm233, 1, 0
    %v572 = vsel %vm234, 1, 0
    %v573 = vsel %vm235, 1, 0
    %v574 = vsel %vm236, 1, 0
    %v575 = vsel %vm237, 1, 0
    %v576 = vsel %vm238, 1, 0
    %v577 = vsel %vm239, 1, 0
    %v578 = vsel %vm240, 1, 0
    %v579 = vsel %vm241, 1, 0
    %v580 = vsel %vm242, 1, 0
    %v581 = vsel %vm243, 1, 0
    %v582 = vsel %vm244, 1, 0
    %v583 = vsel %vm245, 1, 0
    %v584 = vsel %vm246, 1, 0
    %vm585 = vcmp.eq.s32.totalorder %v569, 1
    %vm586 = vcmp.eq.s32.totalorder %v570, 1
    %vm587 = vcmp.eq.s32.totalorder %v571, 1
    %vm588 = vcmp.eq.s32.totalorder %v572, 1
    %vm589 = vcmp.eq.s32.totalorder %v573, 1
    %vm590 = vcmp.eq.s32.totalorder %v574, 1
    %vm591 = vcmp.eq.s32.totalorder %v575, 1
    %vm592 = vcmp.eq.s32.totalorder %v576, 1
    %vm593 = vcmp.eq.s32.totalorder %v577, 1
    %vm594 = vcmp.eq.s32.totalorder %v578, 1
    %vm595 = vcmp.eq.s32.totalorder %v579, 1
    %vm596 = vcmp.eq.s32.totalorder %v580, 1
    %vm597 = vcmp.eq.s32.totalorder %v581, 1
    %vm598 = vcmp.eq.s32.totalorder %v582, 1
    %vm599 = vcmp.eq.s32.totalorder %v583, 1
    %vm600 = vcmp.eq.s32.totalorder %v584, 1
    %v601 = vsel %vm585, %v553, 0.0
    %v602 = vsel %vm586, %v554, 0.0
    %v603 = vsel %vm587, %v555, 0.0
    %v604 = vsel %vm588, %v556, 0.0
    %v605 = vsel %vm589, %v557, 0.0
    %v606 = vsel %vm590, %v558, 0.0
    %v607 = vsel %vm591, %v559, 0.0
    %v608 = vsel %vm592, %v560, 0.0
    %v609 = vsel %vm593, %v561, 0.0
    %v610 = vsel %vm594, %v562, 0.0
    %v611 = vsel %vm595, %v563, 0.0
    %v612 = vsel %vm596, %v564, 0.0
    %v613 = vsel %vm597, %v565, 0.0
    %v614 = vsel %vm598, %v566, 0.0
    %v615 = vsel %vm599, %v567, 0.0
    %v616 = vsel %vm600, %v568, 0.0
    %v617 = vadd.f32 %v513, %v601
    %v618 = vadd.f32 %v514, %v602
    %v619 = vadd.f32 %v515, %v603
    %v620 = vadd.f32 %v516, %v604
    %v621 = vadd.f32 %v517, %v605
    %v622 = vadd.f32 %v518, %v606
    %v623 = vadd.f32 %v519, %v607
    %v624 = vadd.f32 %v520, %v608
    %v625 = vadd.f32 %v521, %v609
    %v626 = vadd.f32 %v522, %v610
    %v627 = vadd.f32 %v523, %v611
    %v628 = vadd.f32 %v524, %v612
    %v629 = vadd.f32 %v525, %v613
    %v630 = vadd.f32 %v526, %v614
    %v631 = vadd.f32 %v527, %v615
    %v632 = vadd.f32 %v528, %v616
    %v633 = vlaneseq
    %v634 = vshrl.u32 %v633, 7
    %v635 = vsub.s32 7, %v634
    %v636 = vrot.slane %v16, %v635
    %v637 = vmul.f32 %v278, %v636
    %v638 = vmul.f32 %v277, %v636
    %v639 = vmul.f32 %v276, %v636
    %v640 = vmul.f32 %v275, %v636
    %v641 = vmul.f32 %v274, %v636
    %v642 = vmul.f32 %v273, %v636
    %v643 = vmul.f32 %v272, %v636
    %v644 = vmul.f32 %v271, %v636
    %v645 = vmul.f32 %v270, %v636
    %v646 = vmul.f32 %v269, %v636
    %v647 = vmul.f32 %v268, %v636
    %v648 = vmul.f32 %v267, %v636
    %v649 = vmul.f32 %v266, %v636
    %v650 = vmul.f32 %v265, %v636
    %v651 = vmul.f32 %v264, %v636
    %v652 = vmul.f32 %v279, %v636
    %v653 = vlaneseq
    %v654 = vshrl.u32 %v653, 7
    %v655 = vsub.s32 4, %v654
    %v656 = vrot.slane %v17, %v655
    %v657 = vadd.f32 %v637, %v656
    %v658 = vadd.f32 %v638, %v656
    %v659 = vadd.f32 %v639, %v656
    %v660 = vadd.f32 %v640, %v656
    %v661 = vadd.f32 %v641, %v656
    %v662 = vadd.f32 %v642, %v656
    %v663 = vadd.f32 %v643, %v656
    %v664 = vadd.f32 %v644, %v656
    %v665 = vadd.f32 %v645, %v656
    %v666 = vadd.f32 %v646, %v656
    %v667 = vadd.f32 %v647, %v656
    %v668 = vadd.f32 %v648, %v656
    %v669 = vadd.f32 %v649, %v656
    %v670 = vadd.f32 %v650, %v656
    %v671 = vadd.f32 %v651, %v656
    %v672 = vadd.f32 %v652, %v656
    %v673 = vsel %vm280, 1, 0
    %v674 = vsel %vm281, 1, 0
    %v675 = vsel %vm282, 1, 0
    %v676 = vsel %vm283, 1, 0
    %v677 = vsel %vm284, 1, 0
    %v678 = vsel %vm285, 1, 0
    %v679 = vsel %vm286, 1, 0
    %v680 = vsel %vm287, 1, 0
    %v681 = vsel %vm288, 1, 0
    %v682 = vsel %vm289, 1, 0
    %v683 = vsel %vm290, 1, 0
    %v684 = vsel %vm291, 1, 0
    %v685 = vsel %vm292, 1, 0
    %v686 = vsel %vm293, 1, 0
    %v687 = vsel %vm294, 1, 0
    %v688 = vsel %vm295, 1, 0
    %vm689 = vcmp.eq.s32.totalorder %v673, 1
    %vm690 = vcmp.eq.s32.totalorder %v674, 1
    %vm691 = vcmp.eq.s32.totalorder %v675, 1
    %vm692 = vcmp.eq.s32.totalorder %v676, 1
    %vm693 = vcmp.eq.s32.totalorder %v677, 1
    %vm694 = vcmp.eq.s32.totalorder %v678, 1
    %vm695 = vcmp.eq.s32.totalorder %v679, 1
    %vm696 = vcmp.eq.s32.totalorder %v680, 1
    %vm697 = vcmp.eq.s32.totalorder %v681, 1
    %vm698 = vcmp.eq.s32.totalorder %v682, 1
    %vm699 = vcmp.eq.s32.totalorder %v683, 1
    %vm700 = vcmp.eq.s32.totalorder %v684, 1
    %vm701 = vcmp.eq.s32.totalorder %v685, 1
    %vm702 = vcmp.eq.s32.totalorder %v686, 1
    %vm703 = vcmp.eq.s32.totalorder %v687, 1
    %vm704 = vcmp.eq.s32.totalorder %v688, 1
    %v705 = vsel %vm689, %v657, 0.0
    %v706 = vsel %vm690, %v658, 0.0
    %v707 = vsel %vm691, %v659, 0.0
    %v708 = vsel %vm692, %v660, 0.0
    %v709 = vsel %vm693, %v661, 0.0
    %v710 = vsel %vm694, %v662, 0.0
    %v711 = vsel %vm695, %v663, 0.0
    %v712 = vsel %vm696, %v664, 0.0
    %v713 = vsel %vm697, %v665, 0.0
    %v714 = vsel %vm698, %v666, 0.0
    %v715 = vsel %vm699, %v667, 0.0
    %v716 = vsel %vm700, %v668, 0.0
    %v717 = vsel %vm701, %v669, 0.0
    %v718 = vsel %vm702, %v670, 0.0
    %v719 = vsel %vm703, %v671, 0.0
    %v720 = vsel %vm704, %v672, 0.0
    %v721 = vadd.f32 %v617, %v705
    %v722 = vadd.f32 %v618, %v706
    %v723 = vadd.f32 %v619, %v707
    %v724 = vadd.f32 %v620, %v708
    %v725 = vadd.f32 %v621, %v709
    %v726 = vadd.f32 %v622, %v710
    %v727 = vadd.f32 %v623, %v711
    %v728 = vadd.f32 %v624, %v712
    %v729 = vadd.f32 %v625, %v713
    %v730 = vadd.f32 %v626, %v714
    %v731 = vadd.f32 %v627, %v715
    %v732 = vadd.f32 %v628, %v716
    %v733 = vadd.f32 %v629, %v717
    %v734 = vadd.f32 %v630, %v718
    %v735 = vadd.f32 %v631, %v719
    %v736 = vadd.f32 %v632, %v720
    %v737 = vlaneseq
    %v738 = vshrl.u32 %v737, 7
    %v739 = vsub.s32 0, %v738
    %v740 = vrot.slane %v17, %v739
    %v741 = vmul.f32 %v327, %v740
    %v742 = vmul.f32 %v326, %v740
    %v743 = vmul.f32 %v325, %v740
    %v744 = vmul.f32 %v324, %v740
    %v745 = vmul.f32 %v323, %v740
    %v746 = vmul.f32 %v322, %v740
    %v747 = vmul.f32 %v321, %v740
    %v748 = vmul.f32 %v320, %v740
    %v749 = vmul.f32 %v319, %v740
    %v750 = vmul.f32 %v318, %v740
    %v751 = vmul.f32 %v317, %v740
    %v752 = vmul.f32 %v316, %v740
    %v753 = vmul.f32 %v315, %v740
    %v754 = vmul.f32 %v314, %v740
    %v755 = vmul.f32 %v313, %v740
    %v756 = vmul.f32 %v328, %v740
    %v757 = vlaneseq
    %v758 = vshrl.u32 %v757, 7
    %v759 = vsub.s32 5, %v758
    %v760 = vrot.slane %v17, %v759
    %v761 = vadd.f32 %v741, %v760
    %v762 = vadd.f32 %v742, %v760
    %v763 = vadd.f32 %v743, %v760
    %v764 = vadd.f32 %v744, %v760
    %v765 = vadd.f32 %v745, %v760
    %v766 = vadd.f32 %v746, %v760
    %v767 = vadd.f32 %v747, %v760
    %v768 = vadd.f32 %v748, %v760
    %v769 = vadd.f32 %v749, %v760
    %v770 = vadd.f32 %v750, %v760
    %v771 = vadd.f32 %v751, %v760
    %v772 = vadd.f32 %v752, %v760
    %v773 = vadd.f32 %v753, %v760
    %v774 = vadd.f32 %v754, %v760
    %v775 = vadd.f32 %v755, %v760
    %v776 = vadd.f32 %v756, %v760
    %v777 = vsel %vm329, 1, 0
    %v778 = vsel %vm330, 1, 0
    %v779 = vsel %vm331, 1, 0
    %v780 = vsel %vm332, 1, 0
    %v781 = vsel %vm333, 1, 0
    %v782 = vsel %vm334, 1, 0
    %v783 = vsel %vm335, 1, 0
    %v784 = vsel %vm336, 1, 0
    %v785 = vsel %vm337, 1, 0
    %v786 = vsel %vm338, 1, 0
    %v787 = vsel %vm339, 1, 0
    %v788 = vsel %vm340, 1, 0
    %v789 = vsel %vm341, 1, 0
    %v790 = vsel %vm342, 1, 0
    %v791 = vsel %vm343, 1, 0
    %v792 = vsel %vm344, 1, 0
    %vm793 = vcmp.eq.s32.totalorder %v777, 1
    %vm794 = vcmp.eq.s32.totalorder %v778, 1
    %vm795 = vcmp.eq.s32.totalorder %v779, 1
    %vm796 = vcmp.eq.s32.totalorder %v780, 1
    %vm797 = vcmp.eq.s32.totalorder %v781, 1
    %vm798 = vcmp.eq.s32.totalorder %v782, 1
    %vm799 = vcmp.eq.s32.totalorder %v783, 1
    %vm800 = vcmp.eq.s32.totalorder %v784, 1
    %vm801 = vcmp.eq.s32.totalorder %v785, 1
    %vm802 = vcmp.eq.s32.totalorder %v786, 1
    %vm803 = vcmp.eq.s32.totalorder %v787, 1
    %vm804 = vcmp.eq.s32.totalorder %v788, 1
    %vm805 = vcmp.eq.s32.totalorder %v789, 1
    %vm806 = vcmp.eq.s32.totalorder %v790, 1
    %vm807 = vcmp.eq.s32.totalorder %v791, 1
    %vm808 = vcmp.eq.s32.totalorder %v792, 1
    %v809 = vsel %vm793, %v761, 0.0
    %v810 = vsel %vm794, %v762, 0.0
    %v811 = vsel %vm795, %v763, 0.0
    %v812 = vsel %vm796, %v764, 0.0
    %v813 = vsel %vm797, %v765, 0.0
    %v814 = vsel %vm798, %v766, 0.0
    %v815 = vsel %vm799, %v767, 0.0
    %v816 = vsel %vm800, %v768, 0.0
    %v817 = vsel %vm801, %v769, 0.0
    %v818 = vsel %vm802, %v770, 0.0
    %v819 = vsel %vm803, %v771, 0.0
    %v820 = vsel %vm804, %v772, 0.0
    %v821 = vsel %vm805, %v773, 0.0
    %v822 = vsel %vm806, %v774, 0.0
    %v823 = vsel %vm807, %v775, 0.0
    %v824 = vsel %vm808, %v776, 0.0
    %v825 = vadd.f32 %v721, %v809
    %v826 = vadd.f32 %v722, %v810
    %v827 = vadd.f32 %v723, %v811
    %v828 = vadd.f32 %v724, %v812
    %v829 = vadd.f32 %v725, %v813
    %v830 = vadd.f32 %v726, %v814
    %v831 = vadd.f32 %v727, %v815
    %v832 = vadd.f32 %v728, %v816
    %v833 = vadd.f32 %v729, %v817
    %v834 = vadd.f32 %v730, %v818
    %v835 = vadd.f32 %v731, %v819
    %v836 = vadd.f32 %v732, %v820
    %v837 = vadd.f32 %v733, %v821
    %v838 = vadd.f32 %v734, %v822
    %v839 = vadd.f32 %v735, %v823
    %v840 = vadd.f32 %v736, %v824
    %v841 = vadd.f32 %v825, %v826
    %v842 = vadd.f32 %v841, %v827
    %v843 = vadd.f32 %v842, %v828
    %v844 = vadd.f32 %v843, %v829
    %v845 = vadd.f32 %v844, %v830
    %v846 = vadd.f32 %v845, %v831
    %v847 = vadd.f32 %v846, %v832
    %v848 = vadd.f32 %v847, %v833
    %v849 = vadd.f32 %v848, %v834
    %v850 = vadd.f32 %v849, %v835
    %v851 = vadd.f32 %v850, %v836
    %v852 = vadd.f32 %v851, %v837
    %v853 = vadd.f32 %v852, %v838
    %v854 = vadd.f32 %v853, %v839
    %v855 = vadd.f32 %v854, %v840
    %v856 = vrot.slane %v855, 4
    %v857 = vadd.f32 %v855, %v856
    %v858 = vrot.slane %v857, 2
    %v859 = vadd.f32 %v857, %v858
    %v860 = vrot.slane %v859, 1
    %v861 = vadd.f32 %v859, %v860
    %v862 = vmul.f32 %v861, 0.0078125
    %v863 = vsub.f32 %v825, %v862
    %v864 = vsub.f32 %v826, %v862
    %v865 = vsub.f32 %v827, %v862
    %v866 = vsub.f32 %v828, %v862
    %v867 = vsub.f32 %v829, %v862
    %v868 = vsub.f32 %v830, %v862
    %v869 = vsub.f32 %v831, %v862
    %v870 = vsub.f32 %v832, %v862
    %v871 = vsub.f32 %v833, %v862
    %v872 = vsub.f32 %v834, %v862
    %v873 = vsub.f32 %v835, %v862
    %v874 = vsub.f32 %v836, %v862
    %v875 = vsub.f32 %v837, %v862
    %v876 = vsub.f32 %v838, %v862
    %v877 = vsub.f32 %v839, %v862
    %v878 = vsub.f32 %v840, %v862
    %v879 = vmul.f32 %v863, %v863
    %v880 = vmul.f32 %v864, %v864
    %v881 = vmul.f32 %v865, %v865
    %v882 = vmul.f32 %v866, %v866
    %v883 = vmul.f32 %v867, %v867
    %v884 = vmul.f32 %v868, %v868
    %v885 = vmul.f32 %v869, %v869
    %v886 = vmul.f32 %v870, %v870
    %v887 = vmul.f32 %v871, %v871
    %v888 = vmul.f32 %v872, %v872
    %v889 = vmul.f32 %v873, %v873
    %v890 = vmul.f32 %v874, %v874
    %v891 = vmul.f32 %v875, %v875
    %v892 = vmul.f32 %v876, %v876
    %v893 = vmul.f32 %v877, %v877
    %v894 = vmul.f32 %v878, %v878
    %v895 = vadd.f32 %v879, %v880
    %v896 = vadd.f32 %v895, %v881
    %v897 = vadd.f32 %v896, %v882
    %v898 = vadd.f32 %v897, %v883
    %v899 = vadd.f32 %v898, %v884
    %v900 = vadd.f32 %v899, %v885
    %v901 = vadd.f32 %v900, %v886
    %v902 = vadd.f32 %v901, %v887
    %v903 = vadd.f32 %v902, %v888
    %v904 = vadd.f32 %v903, %v889
    %v905 = vadd.f32 %v904, %v890
    %v906 = vadd.f32 %v905, %v891
    %v907 = vadd.f32 %v906, %v892
    %v908 = vadd.f32 %v907, %v893
    %v909 = vadd.f32 %v908, %v894
    %v910 = vrot.slane %v909, 4
    %v911 = vadd.f32 %v909, %v910
    %v912 = vrot.slane %v911, 2
    %v913 = vadd.f32 %v911, %v912
    %v914 = vrot.slane %v913, 1
    %v915 = vadd.f32 %v913, %v914
    %v916 = vmul.f32 %v915, 0.0078125
    %v917 = vadd.f32 %v916, 1e-05
    %v918 = vrsqrt.pop %v917
    %v919 = vmul.f32 %v918, %v18
    %v920 = vlaneseq
    %v921 = vshrl.u32 %v920, 7
    %v922 = vsub.s32 4, %v921
    %v923 = vrot.slane %v919, %v922
    %v924 = vmul.f32 %v863, %v923
    %v925 = vmul.f32 %v864, %v923
    %v926 = vmul.f32 %v865, %v923
    %v927 = vmul.f32 %v866, %v923
    %v928 = vmul.f32 %v867, %v923
    %v929 = vmul.f32 %v868, %v923
    %v930 = vmul.f32 %v869, %v923
    %v931 = vmul.f32 %v870, %v923
    %v932 = vmul.f32 %v871, %v923
    %v933 = vmul.f32 %v872, %v923
    %v934 = vmul.f32 %v873, %v923
    %v935 = vmul.f32 %v874, %v923
    %v936 = vmul.f32 %v875, %v923
    %v937 = vmul.f32 %v876, %v923
    %v938 = vmul.f32 %v877, %v923
    %v939 = vmul.f32 %v878, %v923
    %v940 = vlaneseq
    %v941 = vshrl.u32 %v940, 7
    %v942 = vsub.s32 5, %v941
    %v943 = vrot.slane %v18, %v942
    %v944 = vadd.f32 %v924, %v943
    %v945 = vadd.f32 %v925, %v943
    %v946 = vadd.f32 %v926, %v943
    %v947 = vadd.f32 %v927, %v943
    %v948 = vadd.f32 %v928, %v943
    %v949 = vadd.f32 %v929, %v943
    %v950 = vadd.f32 %v930, %v943
    %v951 = vadd.f32 %v931, %v943
    %v952 = vadd.f32 %v932, %v943
    %v953 = vadd.f32 %v933, %v943
    %v954 = vadd.f32 %v934, %v943
    %v955 = vadd.f32 %v935, %v943
    %v956 = vadd.f32 %v936, %v943
    %v957 = vadd.f32 %v937, %v943
    %v958 = vadd.f32 %v938, %v943
    %v959 = vadd.f32 %v939, %v943
    %v960 = vlaneseq
    %v961 = vshrl.u32 %v960, 7
    %v962 = vsub.s32 7, %v961
    %v963 = vrot.slane %v17, %v962
    %v964 = vmul.f32 %v39, %v963
    %v965 = vmul.f32 %v44, %v963
    %v966 = vmul.f32 %v49, %v963
    %v967 = vmul.f32 %v54, %v963
    %v968 = vmul.f32 %v59, %v963
    %v969 = vmul.f32 %v64, %v963
    %v970 = vmul.f32 %v69, %v963
    %v971 = vmul.f32 %v74, %v963
    %v972 = vmul.f32 %v79, %v963
    %v973 = vmul.f32 %v84, %v963
    %v974 = vmul.f32 %v89, %v963
    %v975 = vmul.f32 %v94, %v963
    %v976 = vmul.f32 %v99, %v963
    %v977 = vmul.f32 %v104, %v963
    %v978 = vmul.f32 %v109, %v963
    %v979 = vmul.f32 %v114, %v963
    %v980 = vlaneseq
    %v981 = vshrl.u32 %v980, 7
    %v982 = vsub.s32 2, %v981
    %v983 = vrot.slane %v18, %v982
    %v984 = vadd.f32 %v964, %v983
    %v985 = vadd.f32 %v965, %v983
    %v986 = vadd.f32 %v966, %v983
    %v987 = vadd.f32 %v967, %v983
    %v988 = vadd.f32 %v968, %v983
    %v989 = vadd.f32 %v969, %v983
    %v990 = vadd.f32 %v970, %v983
    %v991 = vadd.f32 %v971, %v983
    %v992 = vadd.f32 %v972, %v983
    %v993 = vadd.f32 %v973, %v983
    %v994 = vadd.f32 %v974, %v983
    %v995 = vadd.f32 %v975, %v983
    %v996 = vadd.f32 %v976, %v983
    %v997 = vadd.f32 %v977, %v983
    %v998 = vadd.f32 %v978, %v983
    %v999 = vadd.f32 %v979, %v983
    %v1000 = vlaneseq
    %v1001 = vshrl.u32 %v1000, 7
    %v1002 = vsub.s32 6, %v1001
    %v1003 = vrot.slane %v17, %v1002
    %v1004 = vmul.f32 %v230, %v1003
    %v1005 = vmul.f32 %v229, %v1003
    %v1006 = vmul.f32 %v228, %v1003
    %v1007 = vmul.f32 %v227, %v1003
    %v1008 = vmul.f32 %v226, %v1003
    %v1009 = vmul.f32 %v225, %v1003
    %v1010 = vmul.f32 %v224, %v1003
    %v1011 = vmul.f32 %v223, %v1003
    %v1012 = vmul.f32 %v222, %v1003
    %v1013 = vmul.f32 %v221, %v1003
    %v1014 = vmul.f32 %v220, %v1003
    %v1015 = vmul.f32 %v219, %v1003
    %v1016 = vmul.f32 %v218, %v1003
    %v1017 = vmul.f32 %v217, %v1003
    %v1018 = vmul.f32 %v216, %v1003
    %v1019 = vmul.f32 %v215, %v1003
    %v1020 = vlaneseq
    %v1021 = vshrl.u32 %v1020, 7
    %v1022 = vsub.s32 1, %v1021
    %v1023 = vrot.slane %v18, %v1022
    %v1024 = vadd.f32 %v1004, %v1023
    %v1025 = vadd.f32 %v1005, %v1023
    %v1026 = vadd.f32 %v1006, %v1023
    %v1027 = vadd.f32 %v1007, %v1023
    %v1028 = vadd.f32 %v1008, %v1023
    %v1029 = vadd.f32 %v1009, %v1023
    %v1030 = vadd.f32 %v1010, %v1023
    %v1031 = vadd.f32 %v1011, %v1023
    %v1032 = vadd.f32 %v1012, %v1023
    %v1033 = vadd.f32 %v1013, %v1023
    %v1034 = vadd.f32 %v1014, %v1023
    %v1035 = vadd.f32 %v1015, %v1023
    %v1036 = vadd.f32 %v1016, %v1023
    %v1037 = vadd.f32 %v1017, %v1023
    %v1038 = vadd.f32 %v1018, %v1023
    %v1039 = vadd.f32 %v1019, %v1023
    %v1040 = vsel %vm585, %v1024, 0.0
    %v1041 = vsel %vm586, %v1025, 0.0
    %v1042 = vsel %vm587, %v1026, 0.0
    %v1043 = vsel %vm588, %v1027, 0.0
    %v1044 = vsel %vm589, %v1028, 0.0
    %v1045 = vsel %vm590, %v1029, 0.0
    %v1046 = vsel %vm591, %v1030, 0.0
    %v1047 = vsel %vm592, %v1031, 0.0
    %v1048 = vsel %vm593, %v1032, 0.0
    %v1049 = vsel %vm594, %v1033, 0.0
    %v1050 = vsel %vm595, %v1034, 0.0
    %v1051 = vsel %vm596, %v1035, 0.0
    %v1052 = vsel %vm597, %v1036, 0.0
    %v1053 = vsel %vm598, %v1037, 0.0
    %v1054 = vsel %vm599, %v1038, 0.0
    %v1055 = vsel %vm600, %v1039, 0.0
    %v1056 = vadd.f32 %v984, %v1040
    %v1057 = vadd.f32 %v985, %v1041
    %v1058 = vadd.f32 %v986, %v1042
    %v1059 = vadd.f32 %v987, %v1043
    %v1060 = vadd.f32 %v988, %v1044
    %v1061 = vadd.f32 %v989, %v1045
    %v1062 = vadd.f32 %v990, %v1046
    %v1063 = vadd.f32 %v991, %v1047
    %v1064 = vadd.f32 %v992, %v1048
    %v1065 = vadd.f32 %v993, %v1049
    %v1066 = vadd.f32 %v994, %v1050
    %v1067 = vadd.f32 %v995, %v1051
    %v1068 = vadd.f32 %v996, %v1052
    %v1069 = vadd.f32 %v997, %v1053
    %v1070 = vadd.f32 %v998, %v1054
    %v1071 = vadd.f32 %v999, %v1055
    %v1072 = vlaneseq
    %v1073 = vshrl.u32 %v1072, 7
    %v1074 = vsub.s32 0, %v1073
    %v1075 = vrot.slane %v18, %v1074
    %v1076 = vmul.f32 %v278, %v1075
    %v1077 = vmul.f32 %v277, %v1075
    %v1078 = vmul.f32 %v276, %v1075
    %v1079 = vmul.f32 %v275, %v1075
    %v1080 = vmul.f32 %v274, %v1075
    %v1081 = vmul.f32 %v273, %v1075
    %v1082 = vmul.f32 %v272, %v1075
    %v1083 = vmul.f32 %v271, %v1075
    %v1084 = vmul.f32 %v270, %v1075
    %v1085 = vmul.f32 %v269, %v1075
    %v1086 = vmul.f32 %v268, %v1075
    %v1087 = vmul.f32 %v267, %v1075
    %v1088 = vmul.f32 %v266, %v1075
    %v1089 = vmul.f32 %v265, %v1075
    %v1090 = vmul.f32 %v264, %v1075
    %v1091 = vmul.f32 %v279, %v1075
    %v1092 = vlaneseq
    %v1093 = vshrl.u32 %v1092, 7
    %v1094 = vsub.s32 3, %v1093
    %v1095 = vrot.slane %v18, %v1094
    %v1096 = vadd.f32 %v1076, %v1095
    %v1097 = vadd.f32 %v1077, %v1095
    %v1098 = vadd.f32 %v1078, %v1095
    %v1099 = vadd.f32 %v1079, %v1095
    %v1100 = vadd.f32 %v1080, %v1095
    %v1101 = vadd.f32 %v1081, %v1095
    %v1102 = vadd.f32 %v1082, %v1095
    %v1103 = vadd.f32 %v1083, %v1095
    %v1104 = vadd.f32 %v1084, %v1095
    %v1105 = vadd.f32 %v1085, %v1095
    %v1106 = vadd.f32 %v1086, %v1095
    %v1107 = vadd.f32 %v1087, %v1095
    %v1108 = vadd.f32 %v1088, %v1095
    %v1109 = vadd.f32 %v1089, %v1095
    %v1110 = vadd.f32 %v1090, %v1095
    %v1111 = vadd.f32 %v1091, %v1095
    %v1112 = vsel %vm689, %v1096, 0.0
    %v1113 = vsel %vm690, %v1097, 0.0
    %v1114 = vsel %vm691, %v1098, 0.0
    %v1115 = vsel %vm692, %v1099, 0.0
    %v1116 = vsel %vm693, %v1100, 0.0
    %v1117 = vsel %vm694, %v1101, 0.0
    %v1118 = vsel %vm695, %v1102, 0.0
    %v1119 = vsel %vm696, %v1103, 0.0
    %v1120 = vsel %vm697, %v1104, 0.0
    %v1121 = vsel %vm698, %v1105, 0.0
    %v1122 = vsel %vm699, %v1106, 0.0
    %v1123 = vsel %vm700, %v1107, 0.0
    %v1124 = vsel %vm701, %v1108, 0.0
    %v1125 = vsel %vm702, %v1109, 0.0
    %v1126 = vsel %vm703, %v1110, 0.0
    %v1127 = vsel %vm704, %v1111, 0.0
    %v1128 = vadd.f32 %v1056, %v1112
    %v1129 = vadd.f32 %v1057, %v1113
    %v1130 = vadd.f32 %v1058, %v1114
    %v1131 = vadd.f32 %v1059, %v1115
    %v1132 = vadd.f32 %v1060, %v1116
    %v1133 = vadd.f32 %v1061, %v1117
    %v1134 = vadd.f32 %v1062, %v1118
    %v1135 = vadd.f32 %v1063, %v1119
    %v1136 = vadd.f32 %v1064, %v1120
    %v1137 = vadd.f32 %v1065, %v1121
    %v1138 = vadd.f32 %v1066, %v1122
    %v1139 = vadd.f32 %v1067, %v1123
    %v1140 = vadd.f32 %v1068, %v1124
    %v1141 = vadd.f32 %v1069, %v1125
    %v1142 = vadd.f32 %v1070, %v1126
    %v1143 = vadd.f32 %v1071, %v1127
    %v1144 = vadd.f32 %v1128, %v1129
    %v1145 = vadd.f32 %v1144, %v1130
    %v1146 = vadd.f32 %v1145, %v1131
    %v1147 = vadd.f32 %v1146, %v1132
    %v1148 = vadd.f32 %v1147, %v1133
    %v1149 = vadd.f32 %v1148, %v1134
    %v1150 = vadd.f32 %v1149, %v1135
    %v1151 = vadd.f32 %v1150, %v1136
    %v1152 = vadd.f32 %v1151, %v1137
    %v1153 = vadd.f32 %v1152, %v1138
    %v1154 = vadd.f32 %v1153, %v1139
    %v1155 = vadd.f32 %v1154, %v1140
    %v1156 = vadd.f32 %v1155, %v1141
    %v1157 = vadd.f32 %v1156, %v1142
    %v1158 = vadd.f32 %v1157, %v1143
    %v1159 = vrot.slane %v1158, 4
    %v1160 = vadd.f32 %v1158, %v1159
    %v1161 = vrot.slane %v1160, 2
    %v1162 = vadd.f32 %v1160, %v1161
    %v1163 = vrot.slane %v1162, 1
    %v1164 = vadd.f32 %v1162, %v1163
    %v1165 = vmul.f32 %v1164, 0.0078125
    %v1166 = vsub.f32 %v1128, %v1165
    %v1167 = vsub.f32 %v1129, %v1165
    %v1168 = vsub.f32 %v1130, %v1165
    %v1169 = vsub.f32 %v1131, %v1165
    %v1170 = vsub.f32 %v1132, %v1165
    %v1171 = vsub.f32 %v1133, %v1165
    %v1172 = vsub.f32 %v1134, %v1165
    %v1173 = vsub.f32 %v1135, %v1165
    %v1174 = vsub.f32 %v1136, %v1165
    %v1175 = vsub.f32 %v1137, %v1165
    %v1176 = vsub.f32 %v1138, %v1165
    %v1177 = vsub.f32 %v1139, %v1165
    %v1178 = vsub.f32 %v1140, %v1165
    %v1179 = vsub.f32 %v1141, %v1165
    %v1180 = vsub.f32 %v1142, %v1165
    %v1181 = vsub.f32 %v1143, %v1165
    %v1182 = vmul.f32 %v1166, %v1166
    %v1183 = vmul.f32 %v1167, %v1167
    %v1184 = vmul.f32 %v1168, %v1168
    %v1185 = vmul.f32 %v1169, %v1169
    %v1186 = vmul.f32 %v1170, %v1170
    %v1187 = vmul.f32 %v1171, %v1171
    %v1188 = vmul.f32 %v1172, %v1172
    %v1189 = vmul.f32 %v1173, %v1173
    %v1190 = vmul.f32 %v1174, %v1174
    %v1191 = vmul.f32 %v1175, %v1175
    %v1192 = vmul.f32 %v1176, %v1176
    %v1193 = vmul.f32 %v1177, %v1177
    %v1194 = vmul.f32 %v1178, %v1178
    %v1195 = vmul.f32 %v1179, %v1179
    %v1196 = vmul.f32 %v1180, %v1180
    %v1197 = vmul.f32 %v1181, %v1181
    %v1198 = vadd.f32 %v1182, %v1183
    %v1199 = vadd.f32 %v1198, %v1184
    %v1200 = vadd.f32 %v1199, %v1185
    %v1201 = vadd.f32 %v1200, %v1186
    %v1202 = vadd.f32 %v1201, %v1187
    %v1203 = vadd.f32 %v1202, %v1188
    %v1204 = vadd.f32 %v1203, %v1189
    %v1205 = vadd.f32 %v1204, %v1190
    %v1206 = vadd.f32 %v1205, %v1191
    %v1207 = vadd.f32 %v1206, %v1192
    %v1208 = vadd.f32 %v1207, %v1193
    %v1209 = vadd.f32 %v1208, %v1194
    %v1210 = vadd.f32 %v1209, %v1195
    %v1211 = vadd.f32 %v1210, %v1196
    %v1212 = vadd.f32 %v1211, %v1197
    %v1213 = vrot.slane %v1212, 4
    %v1214 = vadd.f32 %v1212, %v1213
    %v1215 = vrot.slane %v1214, 2
    %v1216 = vadd.f32 %v1214, %v1215
    %v1217 = vrot.slane %v1216, 1
    %v1218 = vadd.f32 %v1216, %v1217
    %v1219 = vmul.f32 %v1218, 0.0078125
    %v1220 = vadd.f32 %v1219, 1e-05
    %v1221 = vrsqrt.pop %v1220
    %v1222 = vmul.f32 %v1221, %v18
    %v1223 = vlaneseq
    %v1224 = vshrl.u32 %v1223, 7
    %v1225 = vsub.s32 6, %v1224
    %v1226 = vrot.slane %v1222, %v1225
    %v1227 = vmul.f32 %v1166, %v1226
    %v1228 = vmul.f32 %v1167, %v1226
    %v1229 = vmul.f32 %v1168, %v1226
    %v1230 = vmul.f32 %v1169, %v1226
    %v1231 = vmul.f32 %v1170, %v1226
    %v1232 = vmul.f32 %v1171, %v1226
    %v1233 = vmul.f32 %v1172, %v1226
    %v1234 = vmul.f32 %v1173, %v1226
    %v1235 = vmul.f32 %v1174, %v1226
    %v1236 = vmul.f32 %v1175, %v1226
    %v1237 = vmul.f32 %v1176, %v1226
    %v1238 = vmul.f32 %v1177, %v1226
    %v1239 = vmul.f32 %v1178, %v1226
    %v1240 = vmul.f32 %v1179, %v1226
    %v1241 = vmul.f32 %v1180, %v1226
    %v1242 = vmul.f32 %v1181, %v1226
    %v1243 = vlaneseq
    %v1244 = vshrl.u32 %v1243, 7
    %v1245 = vsub.s32 7, %v1244
    %v1246 = vrot.slane %v18, %v1245
    %v1247 = vadd.f32 %v1227, %v1246
    %v1248 = vadd.f32 %v1228, %v1246
    %v1249 = vadd.f32 %v1229, %v1246
    %v1250 = vadd.f32 %v1230, %v1246
    %v1251 = vadd.f32 %v1231, %v1246
    %v1252 = vadd.f32 %v1232, %v1246
    %v1253 = vadd.f32 %v1233, %v1246
    %v1254 = vadd.f32 %v1234, %v1246
    %v1255 = vadd.f32 %v1235, %v1246
    %v1256 = vadd.f32 %v1236, %v1246
    %v1257 = vadd.f32 %v1237, %v1246
    %v1258 = vadd.f32 %v1238, %v1246
    %v1259 = vadd.f32 %v1239, %v1246
    %v1260 = vadd.f32 %v1240, %v1246
    %v1261 = vadd.f32 %v1241, %v1246
    %v1262 = vadd.f32 %v1242, %v1246
    %v1263 = vrot.slane %v1247, 7
    %v1264 = vrot.slane %v1248, 7
    %v1265 = vrot.slane %v1249, 7
    %v1266 = vrot.slane %v1250, 7
    %v1267 = vrot.slane %v1251, 7
    %v1268 = vrot.slane %v1252, 7
    %v1269 = vrot.slane %v1253, 7
    %v1270 = vrot.slane %v1254, 7
    %v1271 = vrot.slane %v1255, 7
    %v1272 = vrot.slane %v1256, 7
    %v1273 = vrot.slane %v1257, 7
    %v1274 = vrot.slane %v1258, 7
    %v1275 = vrot.slane %v1259, 7
    %v1276 = vrot.slane %v1260, 7
    %v1277 = vrot.slane %v1261, 7
    %v1278 = vrot.slane %v1262, 7
    %v1279 = vsel %vm214, %v1277, %v1278
    %v1280 = vsel %vm214, %v1276, %v1277
    %v1281 = vsel %vm214, %v1275, %v1276
    %v1282 = vsel %vm214, %v1274, %v1275
    %v1283 = vsel %vm214, %v1273, %v1274
    %v1284 = vsel %vm214, %v1272, %v1273
    %v1285 = vsel %vm214, %v1271, %v1272
    %v1286 = vsel %vm214, %v1270, %v1271
    %v1287 = vsel %vm214, %v1269, %v1270
    %v1288 = vsel %vm214, %v1268, %v1269
    %v1289 = vsel %vm214, %v1267, %v1268
    %v1290 = vsel %vm214, %v1266, %v1267
    %v1291 = vsel %vm214, %v1265, %v1266
    %v1292 = vsel %vm214, %v1264, %v1265
    %v1293 = vsel %vm214, %v1263, %v1264
    %v1294 = vsel %vm214, %v1278, %v1263
    %v1295 = vsel %vm585, %v1294, 0.0
    %v1296 = vsel %vm586, %v1293, 0.0
    %v1297 = vsel %vm587, %v1292, 0.0
    %v1298 = vsel %vm588, %v1291, 0.0
    %v1299 = vsel %vm589, %v1290, 0.0
    %v1300 = vsel %vm590, %v1289, 0.0
    %v1301 = vsel %vm591, %v1288, 0.0
    %v1302 = vsel %vm592, %v1287, 0.0
    %v1303 = vsel %vm593, %v1286, 0.0
    %v1304 = vsel %vm594, %v1285, 0.0
    %v1305 = vsel %vm595, %v1284, 0.0
    %v1306 = vsel %vm596, %v1283, 0.0
    %v1307 = vsel %vm597, %v1282, 0.0
    %v1308 = vsel %vm598, %v1281, 0.0
    %v1309 = vsel %vm599, %v1280, 0.0
    %v1310 = vsel %vm600, %v1279, 0.0
    %v1311 = vpack.c.bf16 %v1296, %v1295
    %v1312 = vpack.c.bf16 %v1298, %v1297
    %v1313 = vpack.c.bf16 %v1300, %v1299
    %v1314 = vpack.c.bf16 %v1302, %v1301
    %v1315 = vpack.c.bf16 %v1304, %v1303
    %v1316 = vpack.c.bf16 %v1306, %v1305
    %v1317 = vpack.c.bf16 %v1308, %v1307
    %v1318 = vpack.c.bf16 %v1310, %v1309
    %v1319 = vpack.c.bf16 %v1248, %v1247
    %v1320 = vpack.c.bf16 %v1250, %v1249
    %v1321 = vpack.c.bf16 %v1252, %v1251
    %v1322 = vpack.c.bf16 %v1254, %v1253
    %v1323 = vpack.c.bf16 %v1256, %v1255
    %v1324 = vpack.c.bf16 %v1258, %v1257
    %v1325 = vpack.c.bf16 %v1260, %v1259
    %v1326 = vpack.c.bf16 %v1262, %v1261
    %v1327 = vrot.slane %v1247, 1
    %v1328 = vrot.slane %v1248, 1
    %v1329 = vrot.slane %v1249, 1
    %v1330 = vrot.slane %v1250, 1
    %v1331 = vrot.slane %v1251, 1
    %v1332 = vrot.slane %v1252, 1
    %v1333 = vrot.slane %v1253, 1
    %v1334 = vrot.slane %v1254, 1
    %v1335 = vrot.slane %v1255, 1
    %v1336 = vrot.slane %v1256, 1
    %v1337 = vrot.slane %v1257, 1
    %v1338 = vrot.slane %v1258, 1
    %v1339 = vrot.slane %v1259, 1
    %v1340 = vrot.slane %v1260, 1
    %v1341 = vrot.slane %v1261, 1
    %v1342 = vrot.slane %v1262, 1
    %v1343 = vsel %vm263, %v1341, %v1342
    %v1344 = vsel %vm263, %v1340, %v1341
    %v1345 = vsel %vm263, %v1339, %v1340
    %v1346 = vsel %vm263, %v1338, %v1339
    %v1347 = vsel %vm263, %v1337, %v1338
    %v1348 = vsel %vm263, %v1336, %v1337
    %v1349 = vsel %vm263, %v1335, %v1336
    %v1350 = vsel %vm263, %v1334, %v1335
    %v1351 = vsel %vm263, %v1333, %v1334
    %v1352 = vsel %vm263, %v1332, %v1333
    %v1353 = vsel %vm263, %v1331, %v1332
    %v1354 = vsel %vm263, %v1330, %v1331
    %v1355 = vsel %vm263, %v1329, %v1330
    %v1356 = vsel %vm263, %v1328, %v1329
    %v1357 = vsel %vm263, %v1327, %v1328
    %v1358 = vsel %vm263, %v1342, %v1327
    %v1359 = vsel %vm689, %v1357, 0.0
    %v1360 = vsel %vm690, %v1356, 0.0
    %v1361 = vsel %vm691, %v1355, 0.0
    %v1362 = vsel %vm692, %v1354, 0.0
    %v1363 = vsel %vm693, %v1353, 0.0
    %v1364 = vsel %vm694, %v1352, 0.0
    %v1365 = vsel %vm695, %v1351, 0.0
    %v1366 = vsel %vm696, %v1350, 0.0
    %v1367 = vsel %vm697, %v1349, 0.0
    %v1368 = vsel %vm698, %v1348, 0.0
    %v1369 = vsel %vm699, %v1347, 0.0
    %v1370 = vsel %vm700, %v1346, 0.0
    %v1371 = vsel %vm701, %v1345, 0.0
    %v1372 = vsel %vm702, %v1344, 0.0
    %v1373 = vsel %vm703, %v1343, 0.0
    %v1374 = vsel %vm704, %v1358, 0.0
    %v1375 = vpack.c.bf16 %v1360, %v1359
    %v1376 = vpack.c.bf16 %v1362, %v1361
    %v1377 = vpack.c.bf16 %v1364, %v1363
    %v1378 = vpack.c.bf16 %v1366, %v1365
    %v1379 = vpack.c.bf16 %v1368, %v1367
    %v1380 = vpack.c.bf16 %v1370, %v1369
    %v1381 = vpack.c.bf16 %v1372, %v1371
    %v1382 = vpack.c.bf16 %v1374, %v1373
    %v1383 = vld [vmem:[%s2] sm:$0xf]
    %v1384 = vld [vmem:[%s2 + $0x4] sm:$0xf]
    %v1385 = vld [vmem:[%s2 + $0x8] sm:$0xf]
    %v1386 = vld [vmem:[%s2 + $0xc] sm:$0xf]
    %v1387 = vld [vmem:[%s2 + $0x10] sm:$0xf]
    %v1388 = vld [vmem:[%s2 + $0x14] sm:$0xf]
    %v1389 = vld [vmem:[%s2 + $0x18] sm:$0xf]
    %v1390 = vld [vmem:[%s2 + $0x1c] sm:$0xf]
    %v1391 = vld [vmem:[%s2 + $0x20] sm:$0xf]
    %v1392 = vld [vmem:[%s2 + $0x24] sm:$0xf]
    %v1393 = vld [vmem:[%s2 + $0x28] sm:$0xf]
    %v1394 = vld [vmem:[%s2 + $0x2c] sm:$0xf]
    %v1395 = vld [vmem:[%s2 + $0x30] sm:$0xf]
    %v1396 = vld [vmem:[%s2 + $0x34] sm:$0xf]
    %v1397 = vld [vmem:[%s2 + $0x38] sm:$0xf]
    %v1398 = vld [vmem:[%s2 + $0x3c] sm:$0xf]
    %v1399 = vld [vmem:[%s2 + $0x40] sm:$0xf]
    %v1400 = vld [vmem:[%s2 + $0x44] sm:$0xf]
    %v1401 = vld [vmem:[%s2 + $0x48] sm:$0xf]
    %v1402 = vld [vmem:[%s2 + $0x4c] sm:$0xf]
    %v1403 = vld [vmem:[%s2 + $0x50] sm:$0xf]
    %v1404 = vld [vmem:[%s2 + $0x54] sm:$0xf]
    %v1405 = vld [vmem:[%s2 + $0x58] sm:$0xf]
    %v1406 = vld [vmem:[%s2 + $0x5c] sm:$0xf]
    %v1407 = vld [vmem:[%s2 + $0x60] sm:$0xf]
    %v1408 = vld [vmem:[%s2 + $0x64] sm:$0xf]
    %v1409 = vld [vmem:[%s2 + $0x68] sm:$0xf]
    %v1410 = vld [vmem:[%s2 + $0x6c] sm:$0xf]
    %v1411 = vld [vmem:[%s2 + $0x70] sm:$0xf]
    %v1412 = vld [vmem:[%s2 + $0x74] sm:$0xf]
    %v1413 = vld [vmem:[%s2 + $0x78] sm:$0xf]
    %v1414 = vld [vmem:[%s2 + $0x7c] sm:$0xf]
    %v1415 = vld [vmem:[%s2 + $0x80] sm:$0xf]
    %v1416 = vld [vmem:[%s2 + $0x84] sm:$0xf]
    %v1417 = vld [vmem:[%s2 + $0x88] sm:$0xf]
    %v1418 = vld [vmem:[%s2 + $0x8c] sm:$0xf]
    %v1419 = vld [vmem:[%s2 + $0x90] sm:$0xf]
    %v1420 = vld [vmem:[%s2 + $0x94] sm:$0xf]
    %v1421 = vld [vmem:[%s2 + $0x98] sm:$0xf]
    %v1422 = vld [vmem:[%s2 + $0x9c] sm:$0xf]
    %v1423 = vld [vmem:[%s2 + $0xa0] sm:$0xf]
    %v1424 = vld [vmem:[%s2 + $0xa4] sm:$0xf]
    %v1425 = vld [vmem:[%s2 + $0xa8] sm:$0xf]
    %v1426 = vld [vmem:[%s2 + $0xac] sm:$0xf]
    %v1427 = vld [vmem:[%s2 + $0xb0] sm:$0xf]
    %v1428 = vld [vmem:[%s2 + $0xb4] sm:$0xf]
    %v1429 = vld [vmem:[%s2 + $0xb8] sm:$0xf]
    %v1430 = vld [vmem:[%s2 + $0xbc] sm:$0xf]
    %v1479 = vunpack.c.l.b16 %v1383
    %v1480 = vunpack.c.l.b16 %v1384
    %v1481 = vunpack.c.l.b16 %v1385
    %v1482 = vunpack.c.l.b16 %v1386
    %v1483 = vunpack.c.l.b16 %v1387
    %v1484 = vunpack.c.l.b16 %v1388
    %v1485 = vunpack.c.l.b16 %v1389
    %v1486 = vunpack.c.l.b16 %v1390
    %v1487 = vunpack.c.l.b16 %v1391
    %v1488 = vunpack.c.l.b16 %v1392
    %v1489 = vunpack.c.l.b16 %v1393
    %v1490 = vunpack.c.l.b16 %v1394
    %v1491 = vunpack.c.l.b16 %v1395
    %v1492 = vunpack.c.l.b16 %v1396
    %v1493 = vunpack.c.l.b16 %v1397
    %v1494 = vunpack.c.l.b16 %v1398
    %v1495 = vunpack.c.l.b16 %v1399
    %v1496 = vunpack.c.l.b16 %v1400
    %v1497 = vunpack.c.l.b16 %v1401
    %v1498 = vunpack.c.l.b16 %v1402
    %v1499 = vunpack.c.l.b16 %v1403
    %v1500 = vunpack.c.l.b16 %v1404
    %v1501 = vunpack.c.l.b16 %v1405
    %v1502 = vunpack.c.l.b16 %v1406
    %v1503 = vunpack.c.l.b16 %v1407
    %v1504 = vunpack.c.l.b16 %v1408
    %v1505 = vunpack.c.l.b16 %v1409
    %v1506 = vunpack.c.l.b16 %v1410
    %v1507 = vunpack.c.l.b16 %v1411
    %v1508 = vunpack.c.l.b16 %v1412
    %v1509 = vunpack.c.l.b16 %v1413
    %v1510 = vunpack.c.l.b16 %v1414
    %v1511 = vunpack.c.l.b16 %v1415
    %v1512 = vunpack.c.l.b16 %v1416
    %v1513 = vunpack.c.l.b16 %v1417
    %v1514 = vunpack.c.l.b16 %v1418
    %v1515 = vunpack.c.l.b16 %v1419
    %v1516 = vunpack.c.l.b16 %v1420
    %v1517 = vunpack.c.l.b16 %v1421
    %v1518 = vunpack.c.l.b16 %v1422
    %v1519 = vunpack.c.l.b16 %v1423
    %v1520 = vunpack.c.l.b16 %v1424
    %v1521 = vunpack.c.l.b16 %v1425
    %v1522 = vunpack.c.l.b16 %v1426
    %v1523 = vunpack.c.l.b16 %v1427
    %v1524 = vunpack.c.l.b16 %v1428
    %v1525 = vunpack.c.l.b16 %v1429
    %v1526 = vunpack.c.l.b16 %v1430
    %v1527 = vpack.c.b16 %v1480, %v1479
    %v1528 = vpack.c.b16 %v1482, %v1481
    %v1529 = vpack.c.b16 %v1484, %v1483
    %v1530 = vpack.c.b16 %v1486, %v1485
    %v1531 = vpack.c.b16 %v1488, %v1487
    %v1532 = vpack.c.b16 %v1490, %v1489
    %v1533 = vpack.c.b16 %v1492, %v1491
    %v1534 = vpack.c.b16 %v1494, %v1493
    %v1535 = vpack.c.b16 %v1496, %v1495
    %v1536 = vpack.c.b16 %v1498, %v1497
    %v1537 = vpack.c.b16 %v1500, %v1499
    %v1538 = vpack.c.b16 %v1502, %v1501
    %v1539 = vpack.c.b16 %v1504, %v1503
    %v1540 = vpack.c.b16 %v1506, %v1505
    %v1541 = vpack.c.b16 %v1508, %v1507
    %v1542 = vpack.c.b16 %v1510, %v1509
    %v1543 = vpack.c.b16 %v1512, %v1511
    %v1544 = vpack.c.b16 %v1514, %v1513
    %v1545 = vpack.c.b16 %v1516, %v1515
    %v1546 = vpack.c.b16 %v1518, %v1517
    %v1547 = vpack.c.b16 %v1520, %v1519
    %v1548 = vpack.c.b16 %v1522, %v1521
    %v1549 = vpack.c.b16 %v1524, %v1523
    %v1550 = vpack.c.b16 %v1526, %v1525
    %1575 = vmatprep.subr.bf16.mxu0 0
    %1576 = vmatpush1.bf16.msra.mxu0 %v1534
    %1577 = vmatprep.subr.bf16.mxu0 0
    %1578 = vmatpush1.bf16.msra.mxu0 %v1533
    %1579 = vmatprep.subr.bf16.mxu0 0
    %1580 = vmatpush1.bf16.msra.mxu0 %v1532
    %1581 = vmatprep.subr.bf16.mxu0 0
    %1582 = vmatpush1.bf16.msra.mxu0 %v1531
    %1583 = vmatprep.subr.bf16.mxu0 0
    %1584 = vmatpush1.bf16.msra.mxu0 %v1530
    %1585 = vmatprep.subr.bf16.mxu0 0
    %1586 = vmatpush1.bf16.msra.mxu0 %v1529
    %1587 = vmatprep.subr.bf16.mxu0 0
    %1588 = vmatpush1.bf16.msra.mxu0 %v1528
    %1589 = vmatprep.subr.bf16.mxu0 0
    %1590 = vmatpush1.bf16.msra.mxu0 %v1527
    %1591 = vmatprep.subr.bf16.mxu0 0
    %1592 = vmatpush2.bf16.msra.mxu0 %v1542
    %1593 = vmatprep.subr.bf16.mxu0 0
    %1594 = vmatpush2.bf16.msra.mxu0 %v1541
    %1595 = vmatprep.subr.bf16.mxu0 0
    %1596 = vmatpush2.bf16.msra.mxu0 %v1540
    %1597 = vmatprep.subr.bf16.mxu0 0
    %1598 = vmatpush2.bf16.msra.mxu0 %v1539
    %1599 = vmatprep.subr.bf16.mxu0 0
    %1600 = vmatpush2.bf16.msra.mxu0 %v1538
    %1601 = vmatprep.subr.bf16.mxu0 0
    %1602 = vmatpush2.bf16.msra.mxu0 %v1537
    %1603 = vmatprep.subr.bf16.mxu0 0
    %1604 = vmatpush2.bf16.msra.mxu0 %v1536
    %1605 = vmatprep.subr.bf16.mxu0 0
    %1606 = vmatpush2.bf16.msra.mxu0 %v1535
    %1607 = vmatprep.mubr.bf16.mxu0 %v1319
    %1608 = vmatmul.mubr.bf16.gmra.mxu0 %v1311
    %v1609 = vpop.f32.mrf.mxu0
    %v1610 = vadd.f32 0.0, %v1609
    %v1611 = vpop.f32.mrf.mxu0
    %v1612 = vpop.f32.mrf.mxu0
    %v1613 = vadd.f32 0.0, %v1612
    %v1614 = vpop.f32.mrf.mxu0
    %1615 = vmatprep.mubr.bf16.mxu0 %v1320
    %1616 = vmatmul.mubr.bf16.gmra.mxu0 %v1312
    %v1617 = vpop.f32.mrf.mxu0
    %v1618 = vadd.f32 0.0, %v1617
    %v1619 = vpop.f32.mrf.mxu0
    %v1620 = vpop.f32.mrf.mxu0
    %v1621 = vadd.f32 0.0, %v1620
    %v1622 = vpop.f32.mrf.mxu0
    %1623 = vmatprep.mubr.bf16.mxu0 %v1321
    %1624 = vmatmul.mubr.bf16.gmra.mxu0 %v1313
    %v1625 = vpop.f32.mrf.mxu0
    %v1626 = vadd.f32 0.0, %v1625
    %v1627 = vpop.f32.mrf.mxu0
    %v1628 = vpop.f32.mrf.mxu0
    %v1629 = vadd.f32 0.0, %v1628
    %v1630 = vpop.f32.mrf.mxu0
    %1631 = vmatprep.mubr.bf16.mxu0 %v1322
    %1632 = vmatmul.mubr.bf16.gmra.mxu0 %v1314
    %v1633 = vpop.f32.mrf.mxu0
    %v1634 = vadd.f32 0.0, %v1633
    %v1635 = vpop.f32.mrf.mxu0
    %v1636 = vpop.f32.mrf.mxu0
    %v1637 = vadd.f32 0.0, %v1636
    %v1638 = vpop.f32.mrf.mxu0
    %1639 = vmatprep.mubr.bf16.mxu0 %v1323
    %1640 = vmatmul.mubr.bf16.gmra.mxu0 %v1315
    %v1641 = vpop.f32.mrf.mxu0
    %v1642 = vadd.f32 0.0, %v1641
    %v1643 = vpop.f32.mrf.mxu0
    %v1644 = vpop.f32.mrf.mxu0
    %v1645 = vadd.f32 0.0, %v1644
    %v1646 = vpop.f32.mrf.mxu0
    %1647 = vmatprep.mubr.bf16.mxu0 %v1324
    %1648 = vmatmul.mubr.bf16.gmra.mxu0 %v1316
    %v1649 = vpop.f32.mrf.mxu0
    %v1650 = vadd.f32 0.0, %v1649
    %v1651 = vpop.f32.mrf.mxu0
    %v1652 = vpop.f32.mrf.mxu0
    %v1653 = vadd.f32 0.0, %v1652
    %v1654 = vpop.f32.mrf.mxu0
    %1655 = vmatprep.mubr.bf16.mxu0 %v1325
    %1656 = vmatmul.mubr.bf16.gmra.mxu0 %v1317
    %v1657 = vpop.f32.mrf.mxu0
    %v1658 = vadd.f32 0.0, %v1657
    %v1659 = vpop.f32.mrf.mxu0
    %v1660 = vpop.f32.mrf.mxu0
    %v1661 = vadd.f32 0.0, %v1660
    %v1662 = vpop.f32.mrf.mxu0
    %1663 = vmatprep.mubr.bf16.mxu0 %v1326
    %1664 = vmatmul.mubr.bf16.gmra.mxu0 %v1318
    %v1665 = vpop.f32.mrf.mxu0
    %v1666 = vadd.f32 0.0, %v1665
    %v1667 = vpop.f32.mrf.mxu0
    %v1668 = vpop.f32.mrf.mxu0
    %v1669 = vadd.f32 0.0, %v1668
    %v1670 = vpop.f32.mrf.mxu0
    %1671 = vdwg.mxu0
    %1672 = vmatprep.subr.bf16.mxu0 0
    %1673 = vmatpush1.bf16.msra.mxu0 %v1550
    %1674 = vmatprep.subr.bf16.mxu0 0
    %1675 = vmatpush1.bf16.msra.mxu0 %v1549
    %1676 = vmatprep.subr.bf16.mxu0 0
    %1677 = vmatpush1.bf16.msra.mxu0 %v1548
    %1678 = vmatprep.subr.bf16.mxu0 0
    %1679 = vmatpush1.bf16.msra.mxu0 %v1547
    %1680 = vmatprep.subr.bf16.mxu0 0
    %1681 = vmatpush1.bf16.msra.mxu0 %v1546
    %1682 = vmatprep.subr.bf16.mxu0 0
    %1683 = vmatpush1.bf16.msra.mxu0 %v1545
    %1684 = vmatprep.subr.bf16.mxu0 0
    %1685 = vmatpush1.bf16.msra.mxu0 %v1544
    %1686 = vmatprep.subr.bf16.mxu0 0
    %1687 = vmatpush1.bf16.msra.mxu0 %v1543
    %1688 = vmatprep.subr.bf16.mxu0 0
    %1689 = vmatpush2.bf16.msra.mxu0 0
    %1690 = vmatprep.subr.bf16.mxu0 0
    %1691 = vmatpush2.bf16.msra.mxu0 0
    %1692 = vmatprep.subr.bf16.mxu0 0
    %1693 = vmatpush2.bf16.msra.mxu0 0
    %1694 = vmatprep.subr.bf16.mxu0 0
    %1695 = vmatpush2.bf16.msra.mxu0 0
    %1696 = vmatprep.subr.bf16.mxu0 0
    %1697 = vmatpush2.bf16.msra.mxu0 0
    %1698 = vmatprep.subr.bf16.mxu0 0
    %1699 = vmatpush2.bf16.msra.mxu0 0
    %1700 = vmatprep.subr.bf16.mxu0 0
    %1701 = vmatpush2.bf16.msra.mxu0 0
    %1702 = vmatprep.subr.bf16.mxu0 0
    %1703 = vmatpush2.bf16.msra.mxu0 0
    %1704 = vmatprep.mubr.bf16.mxu0 0
    %1705 = vmatmul.mubr.bf16.gmra.mxu0 %v1375
    %v1706 = vpop.f32.mrf.mxu0
    %v1707 = vadd.f32 %v1610, %v1706
    %v1708 = vpop.f32.mrf.mxu0
    %v1709 = vpop.f32.mrf.mxu0
    %v1710 = vadd.f32 %v1613, %v1709
    %v1711 = vpop.f32.mrf.mxu0
    %1712 = vmatprep.mubr.bf16.mxu0 0
    %1713 = vmatmul.mubr.bf16.gmra.mxu0 %v1376
    %v1714 = vpop.f32.mrf.mxu0
    %v1715 = vadd.f32 %v1618, %v1714
    %v1716 = vpop.f32.mrf.mxu0
    %v1717 = vpop.f32.mrf.mxu0
    %v1718 = vadd.f32 %v1621, %v1717
    %v1719 = vpop.f32.mrf.mxu0
    %1720 = vmatprep.mubr.bf16.mxu0 0
    %1721 = vmatmul.mubr.bf16.gmra.mxu0 %v1377
    %v1722 = vpop.f32.mrf.mxu0
    %v1723 = vadd.f32 %v1626, %v1722
    %v1724 = vpop.f32.mrf.mxu0
    %v1725 = vpop.f32.mrf.mxu0
    %v1726 = vadd.f32 %v1629, %v1725
    %v1727 = vpop.f32.mrf.mxu0
    %1728 = vmatprep.mubr.bf16.mxu0 0
    %1729 = vmatmul.mubr.bf16.gmra.mxu0 %v1378
    %v1730 = vpop.f32.mrf.mxu0
    %v1731 = vadd.f32 %v1634, %v1730
    %v1732 = vpop.f32.mrf.mxu0
    %v1733 = vpop.f32.mrf.mxu0
    %v1734 = vadd.f32 %v1637, %v1733
    %v1735 = vpop.f32.mrf.mxu0
    %1736 = vmatprep.mubr.bf16.mxu0 0
    %1737 = vmatmul.mubr.bf16.gmra.mxu0 %v1379
    %v1738 = vpop.f32.mrf.mxu0
    %v1739 = vadd.f32 %v1642, %v1738
    %v1740 = vpop.f32.mrf.mxu0
    %v1741 = vpop.f32.mrf.mxu0
    %v1742 = vadd.f32 %v1645, %v1741
    %v1743 = vpop.f32.mrf.mxu0
    %1744 = vmatprep.mubr.bf16.mxu0 0
    %1745 = vmatmul.mubr.bf16.gmra.mxu0 %v1380
    %v1746 = vpop.f32.mrf.mxu0
    %v1747 = vadd.f32 %v1650, %v1746
    %v1748 = vpop.f32.mrf.mxu0
    %v1749 = vpop.f32.mrf.mxu0
    %v1750 = vadd.f32 %v1653, %v1749
    %v1751 = vpop.f32.mrf.mxu0
    %1752 = vmatprep.mubr.bf16.mxu0 0
    %1753 = vmatmul.mubr.bf16.gmra.mxu0 %v1381
    %v1754 = vpop.f32.mrf.mxu0
    %v1755 = vadd.f32 %v1658, %v1754
    %v1756 = vpop.f32.mrf.mxu0
    %v1757 = vpop.f32.mrf.mxu0
    %v1758 = vadd.f32 %v1661, %v1757
    %v1759 = vpop.f32.mrf.mxu0
    %1760 = vmatprep.mubr.bf16.mxu0 0
    %1761 = vmatmul.mubr.bf16.gmra.mxu0 %v1382
    %v1762 = vpop.f32.mrf.mxu0
    %v1763 = vadd.f32 %v1666, %v1762
    %v1764 = vpop.f32.mrf.mxu0
    %v1765 = vpop.f32.mrf.mxu0
    %v1766 = vadd.f32 %v1669, %v1765
    %v1767 = vpop.f32.mrf.mxu0
    %1768 = vdwg.mxu0
    %v1769 = vadd.f32 %v1707, %v1710
    %v1770 = vadd.f32 %v1769, %v1715
    %v1771 = vadd.f32 %v1770, %v1718
    %v1772 = vadd.f32 %v1771, %v1723
    %v1773 = vadd.f32 %v1772, %v1726
    %v1774 = vadd.f32 %v1773, %v1731
    %v1775 = vadd.f32 %v1774, %v1734
    %v1776 = vadd.f32 %v1775, %v1739
    %v1777 = vadd.f32 %v1776, %v1742
    %v1778 = vadd.f32 %v1777, %v1747
    %v1779 = vadd.f32 %v1778, %v1750
    %v1780 = vadd.f32 %v1779, %v1755
    %v1781 = vadd.f32 %v1780, %v1758
    %v1782 = vadd.f32 %v1781, %v1763
    %v1783 = vadd.f32 %v1782, %v1766
    %v1784 = vrot.slane %v1783, 4
    %v1785 = vadd.f32 %v1783, %v1784
    %v1786 = vrot.slane %v1785, 2
    %v1787 = vadd.f32 %v1785, %v1786
    %v1788 = vrot.slane %v1787, 1
    %v1789 = vadd.f32 %v1787, %v1788
    %v1790 = vmul.f32 %v1789, 0.0078125
    %v1791 = vsub.f32 %v1707, %v1790
    %v1792 = vsub.f32 %v1710, %v1790
    %v1793 = vsub.f32 %v1715, %v1790
    %v1794 = vsub.f32 %v1718, %v1790
    %v1795 = vsub.f32 %v1723, %v1790
    %v1796 = vsub.f32 %v1726, %v1790
    %v1797 = vsub.f32 %v1731, %v1790
    %v1798 = vsub.f32 %v1734, %v1790
    %v1799 = vsub.f32 %v1739, %v1790
    %v1800 = vsub.f32 %v1742, %v1790
    %v1801 = vsub.f32 %v1747, %v1790
    %v1802 = vsub.f32 %v1750, %v1790
    %v1803 = vsub.f32 %v1755, %v1790
    %v1804 = vsub.f32 %v1758, %v1790
    %v1805 = vsub.f32 %v1763, %v1790
    %v1806 = vsub.f32 %v1766, %v1790
    %v1807 = vmul.f32 %v1791, %v1791
    %v1808 = vmul.f32 %v1792, %v1792
    %v1809 = vmul.f32 %v1793, %v1793
    %v1810 = vmul.f32 %v1794, %v1794
    %v1811 = vmul.f32 %v1795, %v1795
    %v1812 = vmul.f32 %v1796, %v1796
    %v1813 = vmul.f32 %v1797, %v1797
    %v1814 = vmul.f32 %v1798, %v1798
    %v1815 = vmul.f32 %v1799, %v1799
    %v1816 = vmul.f32 %v1800, %v1800
    %v1817 = vmul.f32 %v1801, %v1801
    %v1818 = vmul.f32 %v1802, %v1802
    %v1819 = vmul.f32 %v1803, %v1803
    %v1820 = vmul.f32 %v1804, %v1804
    %v1821 = vmul.f32 %v1805, %v1805
    %v1822 = vmul.f32 %v1806, %v1806
    %v1823 = vadd.f32 %v1807, %v1808
    %v1824 = vadd.f32 %v1823, %v1809
    %v1825 = vadd.f32 %v1824, %v1810
    %v1826 = vadd.f32 %v1825, %v1811
    %v1827 = vadd.f32 %v1826, %v1812
    %v1828 = vadd.f32 %v1827, %v1813
    %v1829 = vadd.f32 %v1828, %v1814
    %v1830 = vadd.f32 %v1829, %v1815
    %v1831 = vadd.f32 %v1830, %v1816
    %v1832 = vadd.f32 %v1831, %v1817
    %v1833 = vadd.f32 %v1832, %v1818
    %v1834 = vadd.f32 %v1833, %v1819
    %v1835 = vadd.f32 %v1834, %v1820
    %v1836 = vadd.f32 %v1835, %v1821
    %v1837 = vadd.f32 %v1836, %v1822
    %v1838 = vrot.slane %v1837, 4
    %v1839 = vadd.f32 %v1837, %v1838
    %v1840 = vrot.slane %v1839, 2
    %v1841 = vadd.f32 %v1839, %v1840
    %v1842 = vrot.slane %v1841, 1
    %v1843 = vadd.f32 %v1841, %v1842
    %v1844 = vmul.f32 %v1843, 0.0078125
    %v1845 = vadd.f32 %v1844, 1e-05
    %v1846 = vrsqrt.pop %v1845
    %v1847 = vmul.f32 %v1846, %v19
    %v1848 = vlaneseq
    %v1849 = vshrl.u32 %v1848, 7
    %v1850 = vsub.s32 0, %v1849
    %v1851 = vrot.slane %v1847, %v1850
    %v1852 = vmul.f32 %v1791, %v1851
    %v1853 = vmul.f32 %v1792, %v1851
    %v1854 = vmul.f32 %v1793, %v1851
    %v1855 = vmul.f32 %v1794, %v1851
    %v1856 = vmul.f32 %v1795, %v1851
    %v1857 = vmul.f32 %v1796, %v1851
    %v1858 = vmul.f32 %v1797, %v1851
    %v1859 = vmul.f32 %v1798, %v1851
    %v1860 = vmul.f32 %v1799, %v1851
    %v1861 = vmul.f32 %v1800, %v1851
    %v1862 = vmul.f32 %v1801, %v1851
    %v1863 = vmul.f32 %v1802, %v1851
    %v1864 = vmul.f32 %v1803, %v1851
    %v1865 = vmul.f32 %v1804, %v1851
    %v1866 = vmul.f32 %v1805, %v1851
    %v1867 = vmul.f32 %v1806, %v1851
    %v1868 = vlaneseq
    %v1869 = vshrl.u32 %v1868, 7
    %v1870 = vsub.s32 1, %v1869
    %v1871 = vrot.slane %v19, %v1870
    %v1872 = vadd.f32 %v1852, %v1871
    %v1873 = vadd.f32 %v1853, %v1871
    %v1874 = vadd.f32 %v1854, %v1871
    %v1875 = vadd.f32 %v1855, %v1871
    %v1876 = vadd.f32 %v1856, %v1871
    %v1877 = vadd.f32 %v1857, %v1871
    %v1878 = vadd.f32 %v1858, %v1871
    %v1879 = vadd.f32 %v1859, %v1871
    %v1880 = vadd.f32 %v1860, %v1871
    %v1881 = vadd.f32 %v1861, %v1871
    %v1882 = vadd.f32 %v1862, %v1871
    %v1883 = vadd.f32 %v1863, %v1871
    %v1884 = vadd.f32 %v1864, %v1871
    %v1885 = vadd.f32 %v1865, %v1871
    %v1886 = vadd.f32 %v1866, %v1871
    %v1887 = vadd.f32 %v1867, %v1871
    %v1888 = vsel %vm585, %v230, 0.0
    %v1889 = vsel %vm586, %v229, 0.0
    %v1890 = vsel %vm587, %v228, 0.0
    %v1891 = vsel %vm588, %v227, 0.0
    %v1892 = vsel %vm589, %v226, 0.0
    %v1893 = vsel %vm590, %v225, 0.0
    %v1894 = vsel %vm591, %v224, 0.0
    %v1895 = vsel %vm592, %v223, 0.0
    %v1896 = vsel %vm593, %v222, 0.0
    %v1897 = vsel %vm594, %v221, 0.0
    %v1898 = vsel %vm595, %v220, 0.0
    %v1899 = vsel %vm596, %v219, 0.0
    %v1900 = vsel %vm597, %v218, 0.0
    %v1901 = vsel %vm598, %v217, 0.0
    %v1902 = vsel %vm599, %v216, 0.0
    %v1903 = vsel %vm600, %v215, 0.0
    %v1904 = vadd.f32 %v1888, %v39
    %v1905 = vadd.f32 %v1889, %v44
    %v1906 = vadd.f32 %v1890, %v49
    %v1907 = vadd.f32 %v1891, %v54
    %v1908 = vadd.f32 %v1892, %v59
    %v1909 = vadd.f32 %v1893, %v64
    %v1910 = vadd.f32 %v1894, %v69
    %v1911 = vadd.f32 %v1895, %v74
    %v1912 = vadd.f32 %v1896, %v79
    %v1913 = vadd.f32 %v1897, %v84
    %v1914 = vadd.f32 %v1898, %v89
    %v1915 = vadd.f32 %v1899, %v94
    %v1916 = vadd.f32 %v1900, %v99
    %v1917 = vadd.f32 %v1901, %v104
    %v1918 = vadd.f32 %v1902, %v109
    %v1919 = vadd.f32 %v1903, %v114
    %v1920 = vsel %vm689, %v278, 0.0
    %v1921 = vsel %vm690, %v277, 0.0
    %v1922 = vsel %vm691, %v276, 0.0
    %v1923 = vsel %vm692, %v275, 0.0
    %v1924 = vsel %vm693, %v274, 0.0
    %v1925 = vsel %vm694, %v273, 0.0
    %v1926 = vsel %vm695, %v272, 0.0
    %v1927 = vsel %vm696, %v271, 0.0
    %v1928 = vsel %vm697, %v270, 0.0
    %v1929 = vsel %vm698, %v269, 0.0
    %v1930 = vsel %vm699, %v268, 0.0
    %v1931 = vsel %vm700, %v267, 0.0
    %v1932 = vsel %vm701, %v266, 0.0
    %v1933 = vsel %vm702, %v265, 0.0
    %v1934 = vsel %vm703, %v264, 0.0
    %v1935 = vsel %vm704, %v279, 0.0
    %v1936 = vadd.f32 %v1904, %v1920
    %v1937 = vadd.f32 %v1905, %v1921
    %v1938 = vadd.f32 %v1906, %v1922
    %v1939 = vadd.f32 %v1907, %v1923
    %v1940 = vadd.f32 %v1908, %v1924
    %v1941 = vadd.f32 %v1909, %v1925
    %v1942 = vadd.f32 %v1910, %v1926
    %v1943 = vadd.f32 %v1911, %v1927
    %v1944 = vadd.f32 %v1912, %v1928
    %v1945 = vadd.f32 %v1913, %v1929
    %v1946 = vadd.f32 %v1914, %v1930
    %v1947 = vadd.f32 %v1915, %v1931
    %v1948 = vadd.f32 %v1916, %v1932
    %v1949 = vadd.f32 %v1917, %v1933
    %v1950 = vadd.f32 %v1918, %v1934
    %v1951 = vadd.f32 %v1919, %v1935
    %v1952 = vlaneseq
    %v1953 = vshrl.u32 %v1952, 7
    %v1954 = vsub.s32 2, %v1953
    %v1955 = vrot.slane %v16, %v1954
    %v1956 = vmul.f32 %v1936, %v1955
    %v1957 = vmul.f32 %v1937, %v1955
    %v1958 = vmul.f32 %v1938, %v1955
    %v1959 = vmul.f32 %v1939, %v1955
    %v1960 = vmul.f32 %v1940, %v1955
    %v1961 = vmul.f32 %v1941, %v1955
    %v1962 = vmul.f32 %v1942, %v1955
    %v1963 = vmul.f32 %v1943, %v1955
    %v1964 = vmul.f32 %v1944, %v1955
    %v1965 = vmul.f32 %v1945, %v1955
    %v1966 = vmul.f32 %v1946, %v1955
    %v1967 = vmul.f32 %v1947, %v1955
    %v1968 = vmul.f32 %v1948, %v1955
    %v1969 = vmul.f32 %v1949, %v1955
    %v1970 = vmul.f32 %v1950, %v1955
    %v1971 = vmul.f32 %v1951, %v1955
    %v1972 = vlaneseq
    %v1973 = vshrl.u32 %v1972, 7
    %v1974 = vsub.s32 3, %v1973
    %v1975 = vrot.slane %v16, %v1974
    %v1976 = vadd.f32 %v1956, %v1975
    %v1977 = vadd.f32 %v1957, %v1975
    %v1978 = vadd.f32 %v1958, %v1975
    %v1979 = vadd.f32 %v1959, %v1975
    %v1980 = vadd.f32 %v1960, %v1975
    %v1981 = vadd.f32 %v1961, %v1975
    %v1982 = vadd.f32 %v1962, %v1975
    %v1983 = vadd.f32 %v1963, %v1975
    %v1984 = vadd.f32 %v1964, %v1975
    %v1985 = vadd.f32 %v1965, %v1975
    %v1986 = vadd.f32 %v1966, %v1975
    %v1987 = vadd.f32 %v1967, %v1975
    %v1988 = vadd.f32 %v1968, %v1975
    %v1989 = vadd.f32 %v1969, %v1975
    %v1990 = vadd.f32 %v1970, %v1975
    %v1991 = vadd.f32 %v1971, %v1975
    %v1992 = vadd.f32 %v369, %v944
    %v1993 = vadd.f32 %v370, %v945
    %v1994 = vadd.f32 %v371, %v946
    %v1995 = vadd.f32 %v372, %v947
    %v1996 = vadd.f32 %v373, %v948
    %v1997 = vadd.f32 %v374, %v949
    %v1998 = vadd.f32 %v375, %v950
    %v1999 = vadd.f32 %v376, %v951
    %v2000 = vadd.f32 %v377, %v952
    %v2001 = vadd.f32 %v378, %v953
    %v2002 = vadd.f32 %v379, %v954
    %v2003 = vadd.f32 %v380, %v955
    %v2004 = vadd.f32 %v381, %v956
    %v2005 = vadd.f32 %v382, %v957
    %v2006 = vadd.f32 %v383, %v958
    %v2007 = vadd.f32 %v384, %v959
    %2008 = vst [vmem:[#allocation2] sm:$0xff] %v1992
    %2009 = vst [vmem:[#allocation2 + $0x18] sm:$0xff] %v1993
    %2010 = vst [vmem:[#allocation2 + $0x30] sm:$0xff] %v1994
    %2011 = vst [vmem:[#allocation2 + $0x48] sm:$0xff] %v1995
    %2012 = vst [vmem:[#allocation2 + $0x60] sm:$0xff] %v1996
    %2013 = vst [vmem:[#allocation2 + $0x78] sm:$0xff] %v1997
    %2014 = vst [vmem:[#allocation2 + $0x90] sm:$0xff] %v1998
    %2015 = vst [vmem:[#allocation2 + $0xa8] sm:$0xff] %v1999
    %2016 = vst [vmem:[#allocation2 + $0xc0] sm:$0xff] %v2000
    %2017 = vst [vmem:[#allocation2 + $0xd8] sm:$0xff] %v2001
    %2018 = vst [vmem:[#allocation2 + $0xf0] sm:$0xff] %v2002
    %2019 = vst [vmem:[#allocation2 + $0x108] sm:$0xff] %v2003
    %2020 = vst [vmem:[#allocation2 + $0x120] sm:$0xff] %v2004
    %2021 = vst [vmem:[#allocation2 + $0x138] sm:$0xff] %v2005
    %2022 = vst [vmem:[#allocation2 + $0x150] sm:$0xff] %v2006
    %2023 = vst [vmem:[#allocation2 + $0x168] sm:$0xff] %v2007
    %2040 = vrot.lane.b32.xlu0 %v1976, 96
    %v2041 = vpop.permute.xlu0 %2040
    %2042 = vrot.lane.b32.xlu0 %v1977, 96
    %v2043 = vpop.permute.xlu0 %2042
    %2044 = vrot.lane.b32.xlu0 %v1978, 96
    %v2045 = vpop.permute.xlu0 %2044
    %2046 = vrot.lane.b32.xlu0 %v1979, 96
    %v2047 = vpop.permute.xlu0 %2046
    %2048 = vrot.lane.b32.xlu0 %v1980, 96
    %v2049 = vpop.permute.xlu0 %2048
    %2050 = vrot.lane.b32.xlu0 %v1981, 96
    %v2051 = vpop.permute.xlu0 %2050
    %2052 = vrot.lane.b32.xlu0 %v1982, 96
    %v2053 = vpop.permute.xlu0 %2052
    %2054 = vrot.lane.b32.xlu0 %v1983, 96
    %v2055 = vpop.permute.xlu0 %2054
    %2056 = vrot.lane.b32.xlu0 %v1984, 96
    %v2057 = vpop.permute.xlu0 %2056
    %2058 = vrot.lane.b32.xlu0 %v1985, 96
    %v2059 = vpop.permute.xlu0 %2058
    %2060 = vrot.lane.b32.xlu0 %v1986, 96
    %v2061 = vpop.permute.xlu0 %2060
    %2062 = vrot.lane.b32.xlu0 %v1987, 96
    %v2063 = vpop.permute.xlu0 %2062
    %2064 = vrot.lane.b32.xlu0 %v1988, 96
    %v2065 = vpop.permute.xlu0 %2064
    %2066 = vrot.lane.b32.xlu0 %v1989, 96
    %v2067 = vpop.permute.xlu0 %2066
    %2068 = vrot.lane.b32.xlu0 %v1990, 96
    %v2069 = vpop.permute.xlu0 %2068
    %2070 = vrot.lane.b32.xlu0 %v1991, 96
    %v2071 = vpop.permute.xlu0 %2070
    %vm2088 = vcmask 785408
    %v2089 = vsel %vm2088, %v1872, %v2041
    %v2090 = vsel %vm2088, %v1873, %v2043
    %v2091 = vsel %vm2088, %v1874, %v2045
    %v2092 = vsel %vm2088, %v1875, %v2047
    %v2093 = vsel %vm2088, %v1876, %v2049
    %v2094 = vsel %vm2088, %v1877, %v2051
    %v2095 = vsel %vm2088, %v1878, %v2053
    %v2096 = vsel %vm2088, %v1879, %v2055
    %v2097 = vsel %vm2088, %v1880, %v2057
    %v2098 = vsel %vm2088, %v1881, %v2059
    %v2099 = vsel %vm2088, %v1882, %v2061
    %v2100 = vsel %vm2088, %v1883, %v2063
    %v2101 = vsel %vm2088, %v1884, %v2065
    %v2102 = vsel %vm2088, %v1885, %v2067
    %v2103 = vsel %vm2088, %v1886, %v2069
    %v2104 = vsel %vm2088, %v1887, %v2071
    %2105 = vst [vmem:[#allocation2 + $0x8] sm:$0xff] %v2089
    %vm2106 = vcmask 261120
    %2107 = vst.msk [vmem:[#allocation2 + $0x10] sm:$0xff] %vm2106, %v2041
    %2108 = vst [vmem:[#allocation2 + $0x20] sm:$0xff] %v2090
    %2109 = vst.msk [vmem:[#allocation2 + $0x28] sm:$0xff] %vm2106, %v2043
    %2110 = vst [vmem:[#allocation2 + $0x38] sm:$0xff] %v2091
    %2111 = vst.msk [vmem:[#allocation2 + $0x40] sm:$0xff] %vm2106, %v2045
    %2112 = vst [vmem:[#allocation2 + $0x50] sm:$0xff] %v2092
    %2113 = vst.msk [vmem:[#allocation2 + $0x58] sm:$0xff] %vm2106, %v2047
    %2114 = vst [vmem:[#allocation2 + $0x68] sm:$0xff] %v2093
    %2115 = vst.msk [vmem:[#allocation2 + $0x70] sm:$0xff] %vm2106, %v2049
    %2116 = vst [vmem:[#allocation2 + $0x80] sm:$0xff] %v2094
    %2117 = vst.msk [vmem:[#allocation2 + $0x88] sm:$0xff] %vm2106, %v2051
    %2118 = vst [vmem:[#allocation2 + $0x98] sm:$0xff] %v2095
    %2119 = vst.msk [vmem:[#allocation2 + $0xa0] sm:$0xff] %vm2106, %v2053
    %2120 = vst [vmem:[#allocation2 + $0xb0] sm:$0xff] %v2096
    %2121 = vst.msk [vmem:[#allocation2 + $0xb8] sm:$0xff] %vm2106, %v2055
    %2122 = vst [vmem:[#allocation2 + $0xc8] sm:$0xff] %v2097
    %2123 = vst.msk [vmem:[#allocation2 + $0xd0] sm:$0xff] %vm2106, %v2057
    %2124 = vst [vmem:[#allocation2 + $0xe0] sm:$0xff] %v2098
    %2125 = vst.msk [vmem:[#allocation2 + $0xe8] sm:$0xff] %vm2106, %v2059
    %2126 = vst [vmem:[#allocation2 + $0xf8] sm:$0xff] %v2099
    %2127 = vst.msk [vmem:[#allocation2 + $0x100] sm:$0xff] %vm2106, %v2061
    %2128 = vst [vmem:[#allocation2 + $0x110] sm:$0xff] %v2100
    %2129 = vst.msk [vmem:[#allocation2 + $0x118] sm:$0xff] %vm2106, %v2063
    %2130 = vst [vmem:[#allocation2 + $0x128] sm:$0xff] %v2101
    %2131 = vst.msk [vmem:[#allocation2 + $0x130] sm:$0xff] %vm2106, %v2065
    %2132 = vst [vmem:[#allocation2 + $0x140] sm:$0xff] %v2102
    %2133 = vst.msk [vmem:[#allocation2 + $0x148] sm:$0xff] %vm2106, %v2067
    %2134 = vst [vmem:[#allocation2 + $0x158] sm:$0xff] %v2103
    %2135 = vst.msk [vmem:[#allocation2 + $0x160] sm:$0xff] %vm2106, %v2069
    %2136 = vst [vmem:[#allocation2 + $0x170] sm:$0xff] %v2104
    %2137 = vst.msk [vmem:[#allocation2 + $0x178] sm:$0xff] %vm2106, %v2071
    // Predicated region
    $region14: #{inception_a.1} parent=1 // pred_check
      _
    $region15: #{inception_a.1} parent=1 // pred_check_branch
      %2139 = sbr.rel (0) target = $region17
    $region16: #{inception_a.1} parent=1 // pred_region
      %s2141 = ssub.s32 6144, 6144
      %2142 = vsyncadd [#allocation3], %s2141
      %s2143 = sshll.u32 [#allocation2], 4
      %s2144 = int_to_ptr.vmem [resolvable:$true] %s2143
      %2149 = dma.vmem_to_hbm [thread:$0]  %s2144, 6144, %s3, [#allocation3], 384, 384, 24
    $region17: #{inception_a.1} parent=1 // pred_fallthru
      _
    // Predicated region
    $region18: #{inception_a.1} parent=1 // pred_check
      _
    $region19: #{inception_a.1} parent=1 // pred_check_branch
      %2151 = sbr.rel (0) target = $region21
    $region20: #{inception_a.1} parent=1 // pred_region
      %2152 = dma.done [#allocation3], 6144
    $region21: #{inception_a.1} parent=1 // pred_fallthru
      _
    %2153 = vsyncpa [#allocation3], 1

</llo_original>
